<compile_context>
chip_gen: v6e
topology: v6e:2x2x1
jax: 0.10.0
libtpu: 0.0.40
codegen_flags: <defaults>
</compile_context>

<pallas_src>
import functools

import jax
import jax.numpy as jnp
from jax import lax
from jax.experimental import pallas as pl
from jax.experimental.pallas import tpu as pltpu


# ----------------------------- fused attention + projection kernel -----------------------------
def _mha_fused_kernel(x_ref, wqkv_ref, wproj_t_ref, b_ref, o_ref,
                      kv_scratch, q_scratch, ctx_scratch, *,
                      n_heads, head_size, q_tile, approx_recip):
    # x_ref:       (1, T, C)       full sequence block for this batch element
    # wqkv_ref:    (C, 3*H*hs)     stacked [Wq | Wk | Wv], heads concatenated on lanes
    # wproj_t_ref: (H*hs, n_embd)  projection weight, pre-transposed in the wrapper
    # b_ref:       (1, n_embd)     projection bias (f32)
    # o_ref:       (1, tq, n_embd) final output block (lane-dense)
    # kv_scratch:  (T, 2*H*hs)     K/V for the whole sequence, persistent across q-tiles
    # q_scratch:   (tq, H*hs)      queries for this tile (per-head lane slices read from VMEM)
    # ctx_scratch: (tq, H*hs)      per-head contexts, projected once after the head loop
    H, hs = n_heads, head_size
    Dh = H * hs
    T = x_ref.shape[1]
    tq = q_tile
    qi = pl.program_id(1)
    cdt = wqkv_ref.dtype                                   # compute (MXU operand) dtype

    # K/V for the full sequence: compute once per batch element, reuse for every q-tile.
    @pl.when(qi == 0)
    def _():
        kv = jnp.dot(x_ref[0], wqkv_ref[:, Dh:], preferred_element_type=jnp.float32)
        kv_scratch[...] = kv.astype(cdt)

    # Queries for this tile, sliced from the already-resident x block (no 2nd input stream).
    q_start = pl.multiple_of(qi * tq, tq)
    x_q = x_ref[0, pl.ds(q_start, tq), :]                  # (tq, C)
    scale = head_size ** (-0.5)
    q_scratch[...] = (jnp.dot(x_q, wqkv_ref[:, :Dh], preferred_element_type=jnp.float32)
                      * scale).astype(cdt)                 # scale folded into q once

    # Additive causal mask bias (0 / -1e30), built once per grid step (f32).
    row = qi * tq + lax.broadcasted_iota(jnp.int32, (tq, T), 0)
    col = lax.broadcasted_iota(jnp.int32, (tq, T), 1)
    mask_bias = jnp.where(col <= row, 0.0, -1e30).astype(jnp.float32)

    # Per-head attention; context stored at its lane offset (VMEM masked stores are cheap here).
    for h in range(H):                                     # static unroll; H is small
        lo = h * hs
        # scores = q_h @ k_h^T, operands read straight from VMEM ref slices.
        s = lax.dot_general(q_scratch[:, lo:lo + hs], kv_scratch[:, lo:lo + hs],
                            (((1,), (1,)), ((), ())),
                            preferred_element_type=jnp.float32) + mask_bias   # (tq, T) f32
        # numerically-stable softmax (f32)
        m = jnp.max(s, axis=-1, keepdims=True)
        p = jnp.exp(s - m)
        denom = jnp.sum(p, axis=-1, keepdims=True)
        wei = (p * pl.reciprocal(denom, approx=approx_recip)).astype(cdt)
        ctx_scratch[:, lo:lo + hs] = jnp.dot(
            wei, kv_scratch[:, Dh + lo:Dh + lo + hs],
            preferred_element_type=jnp.float32).astype(cdt)                   # (tq, hs)

    # Single lane-dense projection over all heads (K = Dh) + bias, f32 accumulation.
    y = jnp.dot(ctx_scratch[...], wproj_t_ref[...],
                preferred_element_type=jnp.float32) + b_ref[...]
    o_ref[0] = y.astype(o_ref.dtype)


def _choose_q_tile(T, max_tile):
    """Largest legal query tile, preferring MXU/sublane-aligned sizes (256 > 128 > 16 > 8)."""
    if T <= max_tile:
        return T                                           # full extent is always legal
    for align in (256, 128, 16, 8):
        start = (max_tile // align) * align
        for t in range(start, align - 1, -align):
            if T % t == 0:
                return t
    return T                                               # fall back to no tiling


# ----------------------------- wrapper -----------------------------
def multi_head_attention(x, params, *, compute_dtype=jnp.bfloat16, q_tile=256):
    """Forward pass equivalent to MultiHeadAttention.forward (eval mode).

    x: (B, T, C); params: wq/wk/wv (H, C, hs), w_proj (n_embd, H*hs), b_proj (n_embd,)
    """
    B, T, C = x.shape
    wq, wk, wv = params["wq"], params["wk"], params["wv"]
    H, _, hs = wq.shape
    Dh = H * hs
    n_embd = params["w_proj"].shape[0]

    # Stack per-head weights: (H, C, hs) -> (C, H*hs), heads concatenated along lanes
    # (matches torch.cat([head(x) for head in heads], dim=-1) ordering).
    def _stack(w):
        return jnp.transpose(w, (1, 0, 2)).reshape(C, Dh)

    wqkv = jnp.concatenate([_stack(wq), _stack(wk), _stack(wv)], axis=-1).astype(compute_dtype)
    wproj_t = params["w_proj"].T.astype(compute_dtype)     # (Dh, n_embd), transposed once here
    b2d = params["b_proj"].reshape(1, n_embd).astype(jnp.float32)
    x_c = x.astype(compute_dtype)

    tq = _choose_q_tile(T, q_tile)
    nq = T // tq

    kernel = functools.partial(
        _mha_fused_kernel,
        n_heads=H,
        head_size=hs,
        q_tile=tq,
        approx_recip=(compute_dtype != jnp.float32),
    )

    return pl.pallas_call(
        kernel,
        out_shape=jax.ShapeDtypeStruct((B, T, n_embd), x.dtype),
        grid_spec=pltpu.PrefetchScalarGridSpec(
            num_scalar_prefetch=0,
            grid=(B, nq),
            in_specs=[
                pl.BlockSpec((1, T, C), lambda b, qi: (b, 0, 0)),     # full sequence (Q/K/V source)
                pl.BlockSpec((C, 3 * Dh), lambda b, qi: (0, 0)),      # stacked QKV weights
                pl.BlockSpec((Dh, n_embd), lambda b, qi: (0, 0)),     # projection weight^T
                pl.BlockSpec((1, n_embd), lambda b, qi: (0, 0)),      # projection bias
            ],
            out_specs=pl.BlockSpec((1, tq, n_embd), lambda b, qi: (b, qi, 0)),
            scratch_shapes=[
                pltpu.VMEM((T, 2 * Dh), compute_dtype),               # resident K/V
                pltpu.VMEM((tq, Dh), compute_dtype),                  # queries for this tile
                pltpu.VMEM((tq, Dh), compute_dtype),                  # per-head context accumulator
            ],
        ),
        compiler_params=pltpu.CompilerParams(
            # batch axis shards across TensorCores (megacore); q-tile axis must be
            # "arbitrary" because K/V scratch is computed at qi == 0 and reused.
            dimension_semantics=("parallel", "arbitrary"),
            vmem_limit_bytes=64 * 1024 * 1024,
        ),
    )(x_c, wqkv, wproj_t, b2d)


# ----------------------------- params + reference -----------------------------
def init_params(key, n_embd, n_heads, head_size):
    ks = jax.random.split(key, 5)
    scale_in = n_embd ** -0.5
    wq = jax.random.normal(ks[0], (n_heads, n_embd, head_size), jnp.float32) * scale_in
    wk = jax.random.normal(ks[1], (n_heads, n_embd, head_size), jnp.float32) * scale_in
    wv = jax.random.normal(ks[2], (n_heads, n_embd, head_size), jnp.float32) * scale_in
    d_cat = n_heads * head_size
    w_proj = jax.random.normal(ks[3], (n_embd, d_cat), jnp.float32) * (d_cat ** -0.5)
    b_proj = jax.random.normal(ks[4], (n_embd,), jnp.float32) * 0.01
    return {"wq": wq, "wk": wk, "wv": wv, "w_proj": w_proj, "b_proj": b_proj}


def _reference(x, params):
    """Pure-JAX f32 reference matching the PyTorch module (eval mode)."""
    B, T, C = x.shape
    q = jnp.einsum("btc,hcd->bhtd", x, params["wq"])
    k = jnp.einsum("btc,hcd->bhtd", x, params["wk"])
    v = jnp.einsum("btc,hcd->bhtd", x, params["wv"])
    hs = q.shape[-1]
    scores = jnp.einsum("bhtd,bhsd->bhts", q, k) * hs ** (-0.5)
    mask = jnp.tril(jnp.ones((T, T), bool))
    scores = jnp.where(mask[None, None], scores, -jnp.inf)
    wei = jax.nn.softmax(scores, axis=-1)
    out = jnp.einsum("bhts,bhsd->bhtd", wei, v)
    cat = jnp.transpose(out, (0, 2, 1, 3)).reshape(B, T, -1)
    return cat @ params["w_proj"].T + params["b_proj"]


if __name__ == "__main__":
    # small shapes consistent with the module
    B, T = 2, 8            # batch, sequence_len
    n_embd = 32
    n_heads = 4
    head_size = 8
    dropout = 0.0          # eval mode

    key = jax.random.PRNGKey(0)
    kx, kp = jax.random.split(key)
    x = jax.random.normal(kx, (B, T, n_embd), jnp.float32)
    params = init_params(kp, n_embd, n_heads, head_size)

    ref = _reference(x, params)

    # Full-precision path: tight check of kernel logic (masking, softmax, fusion).
    out_f32 = jax.block_until_ready(
        multi_head_attention(x, params, compute_dtype=jnp.float32))
    assert out_f32.shape == (B, T, n_embd)
    assert jnp.allclose(out_f32, ref, atol=1e-4, rtol=1e-4), "f32 kernel mismatch vs reference"

    # Default bf16-operand fast path (f32 accumulation): loose tolerance for quantization.
    out_bf16 = jax.block_until_ready(multi_head_attention(x, params))
    assert out_bf16.shape == (B, T, n_embd)
    assert jnp.allclose(out_bf16, ref, atol=1e-1, rtol=1e-1), "bf16 kernel mismatch vs reference"

    print("KERNEL_OK")
</pallas_src>

<mosaic_0001>
module attributes {stable_mosaic.version = 11 : i64} {
  func.func @_mha_fused_kernel(%arg0: i32, %arg1: i32, %arg2: memref<1x8x32xf32, #tpu.memory_space<vmem>>, %arg3: memref<32x96xf32, #tpu.memory_space<vmem>>, %arg4: memref<32x32xf32, #tpu.memory_space<vmem>>, %arg5: memref<1x32xf32, #tpu.memory_space<vmem>>, %arg6: memref<1x8x32xf32, #tpu.memory_space<vmem>>, %arg7: memref<8x64xf32, #tpu.memory_space<vmem>>, %arg8: memref<8x32xf32, #tpu.memory_space<vmem>>, %arg9: memref<8x32xf32, #tpu.memory_space<vmem>>) attributes {dimension_semantics = [#tpu.dimension_semantics<parallel>, #tpu.dimension_semantics<arbitrary>], iteration_bounds = array<i64: 2, 1>, scalar_prefetch = 0 : i64, scratch_operands = 3 : i64, tpu.core_type = #tpu.core_type<tc>, window_params = [{transform_indices = @transform_0, window_bounds = array<i64: 1, 8, 32>}, {pipeline_mode = #tpu.pipeline_mode<synchronous>, transform_indices = @transform_1, window_bounds = array<i64: 32, 96>}, {pipeline_mode = #tpu.pipeline_mode<synchronous>, transform_indices = @transform_2, window_bounds = array<i64: 32, 32>}, {pipeline_mode = #tpu.pipeline_mode<synchronous>, transform_indices = @transform_3, window_bounds = array<i64: 1, 32>}, {transform_indices = @transform_4, window_bounds = array<i64: 1, 8, 32>}]} {
    %c0_i32 = arith.constant 0 : i32
    %0 = arith.cmpi eq, %arg1, %c0_i32 : i32
    %1 = arith.extui %0 : i1 to i32
    %c0_i32_0 = arith.constant 0 : i32
    %2 = arith.cmpi ne, %1, %c0_i32_0 : i32
    scf.if %2 {
      %c0_61 = arith.constant 0 : index
      %c0_62 = arith.constant 0 : index
      %c0_63 = arith.constant 0 : index
      %99 = vector.load %arg2[%c0_61, %c0_62, %c0_63] : memref<1x8x32xf32, #tpu.memory_space<vmem>>, vector<1x8x32xf32>
      %100 = vector.shape_cast %99 : vector<1x8x32xf32> to vector<8x32xf32>
      %c0_64 = arith.constant 0 : index
      %c32_65 = arith.constant 32 : index
      %101 = vector.load %arg3[%c0_64, %c32_65] : memref<32x96xf32, #tpu.memory_space<vmem>>, vector<32x64xf32>
      %cst_66 = arith.constant dense<0.000000e+00> : vector<8x64xf32>
      %102 = tpu.matmul %100, %101, %cst_66 {dimension_numbers = #tpu.dot_dimension_numbers<[1], [0], [0], [1], [0, 0, 1, 1], [], []>} : vector<8x32xf32>, vector<32x64xf32>, vector<8x64xf32> -> vector<8x64xf32>
      %c0_67 = arith.constant 0 : index
      %c0_68 = arith.constant 0 : index
      %103 = vector.load %arg7[%c0_67, %c0_68] : memref<8x64xf32, #tpu.memory_space<vmem>>, vector<8x64xf32>
      tpu.vector_store %arg7[%c0_67, %c0_68], %102 {strides = array<i32>} : memref<8x64xf32, #tpu.memory_space<vmem>>, vector<8x64xf32>,
    } else {
    }
    %c8_i32 = arith.constant 8 : i32
    %3 = arith.muli %arg1, %c8_i32 : i32
    %4 = tpu.assume_multiple %3, 8 : i32
    %c0 = arith.constant 0 : index
    %5 = arith.index_cast %4 : i32 to index
    %c0_1 = arith.constant 0 : index
    %6 = vector.load %arg2[%c0, %5, %c0_1] : memref<1x8x32xf32, #tpu.memory_space<vmem>>, vector<1x8x32xf32>
    %7 = vector.shape_cast %6 : vector<1x8x32xf32> to vector<8x32xf32>
    %c0_2 = arith.constant 0 : index
    %c0_3 = arith.constant 0 : index
    %8 = vector.load %arg3[%c0_2, %c0_3] : memref<32x96xf32, #tpu.memory_space<vmem>>, vector<32x32xf32>
    %cst = arith.constant dense<0.000000e+00> : vector<8x32xf32>
    %9 = tpu.matmul %7, %8, %cst {dimension_numbers = #tpu.dot_dimension_numbers<[1], [0], [0], [1], [0, 0, 1, 1], [], []>} : vector<8x32xf32>, vector<32x32xf32>, vector<8x32xf32> -> vector<8x32xf32>
    %cst_4 = arith.constant 0.353553385 : f32
    %10 = vector.broadcast %cst_4 : f32 to vector<8x32xf32>
    %11 = arith.mulf %9, %10 : vector<8x32xf32>
    %c0_5 = arith.constant 0 : index
    %c0_6 = arith.constant 0 : index
    %12 = vector.load %arg8[%c0_5, %c0_6] : memref<8x32xf32, #tpu.memory_space<vmem>>, vector<8x32xf32>
    tpu.vector_store %arg8[%c0_5, %c0_6], %11 {strides = array<i32>} : memref<8x32xf32, #tpu.memory_space<vmem>>, vector<8x32xf32>,
    %c8_i32_7 = arith.constant 8 : i32
    %13 = arith.muli %arg1, %c8_i32_7 : i32
    %14 = tpu.iota {dimensions = array<i32: 0>} : vector<8x8xi32>
    %15 = vector.broadcast %13 : i32 to vector<8x8xi32>
    %16 = arith.addi %15, %14 : vector<8x8xi32>
    %17 = tpu.iota {dimensions = array<i32: 1>} : vector<8x8xi32>
    %18 = arith.cmpi sle, %17, %16 : vector<8x8xi32>
    %cst_8 = arith.constant 0.000000e+00 : f32
    %cst_9 = arith.constant -1.000000e+30 : f32
    %19 = vector.broadcast %cst_8 : f32 to vector<8x8xf32>
    %20 = vector.broadcast %cst_9 : f32 to vector<8x8xf32>
    %21 = arith.select %18, %19, %20 : vector<8x8xi1>, vector<8x8xf32>
    %c0_10 = arith.constant 0 : index
    %c0_11 = arith.constant 0 : index
    %22 = vector.load %arg8[%c0_10, %c0_11] : memref<8x32xf32, #tpu.memory_space<vmem>>, vector<8x8xf32>
    %c0_12 = arith.constant 0 : index
    %c0_13 = arith.constant 0 : index
    %23 = vector.load %arg7[%c0_12, %c0_13] : memref<8x64xf32, #tpu.memory_space<vmem>>, vector<8x8xf32>
    %cst_14 = arith.constant dense<0.000000e+00> : vector<8x8xf32>
    %24 = tpu.matmul %22, %23, %cst_14 {dimension_numbers = #tpu.dot_dimension_numbers<[1], [1], [0], [0], [0, 0, 1, 0], [], []>} : vector<8x8xf32>, vector<8x8xf32>, vector<8x8xf32> -> vector<8x8xf32>
    %25 = arith.addf %24, %21 : vector<8x8xf32>
    %cst_15 = arith.constant dense<0xFF800000> : vector<8xf32>
    %26 = vector.multi_reduction <maximumf>, %25, %cst_15 [1] : vector<8x8xf32> to vector<8xf32>
    %27 = vector.shape_cast %26 : vector<8xf32> to vector<8x1xf32>
    %28 = vector.broadcast %27 : vector<8x1xf32> to vector<8x8xf32>
    %29 = arith.subf %25, %28 : vector<8x8xf32>
    %30 = math.exp %29 : vector<8x8xf32>
    %cst_16 = arith.constant dense<0.000000e+00> : vector<8xf32>
    %31 = vector.multi_reduction <add>, %30, %cst_16 [1] : vector<8x8xf32> to vector<8xf32>
    %32 = vector.shape_cast %31 : vector<8xf32> to vector<8x1xf32>
    %33 = tpu.reciprocal %32 : vector<8x1xf32> -> vector<8x1xf32>
    %34 = vector.broadcast %33 : vector<8x1xf32> to vector<8x8xf32>
    %35 = arith.mulf %30, %34 : vector<8x8xf32>
    %c0_17 = arith.constant 0 : index
    %c32 = arith.constant 32 : index
    %36 = vector.load %arg7[%c0_17, %c32] : memref<8x64xf32, #tpu.memory_space<vmem>>, vector<8x8xf32>
    %cst_18 = arith.constant dense<0.000000e+00> : vector<8x8xf32>
    %37 = tpu.matmul %35, %36, %cst_18 {dimension_numbers = #tpu.dot_dimension_numbers<[1], [0], [0], [1], [0, 0, 1, 1], [], []>} : vector<8x8xf32>, vector<8x8xf32>, vector<8x8xf32> -> vector<8x8xf32>
    %c0_19 = arith.constant 0 : index
    %c0_20 = arith.constant 0 : index
    %38 = vector.load %arg9[%c0_19, %c0_20] : memref<8x32xf32, #tpu.memory_space<vmem>>, vector<8x8xf32>
    tpu.vector_store %arg9[%c0_19, %c0_20], %37 {strides = array<i32>} : memref<8x32xf32, #tpu.memory_space<vmem>>, vector<8x8xf32>,
    %c0_21 = arith.constant 0 : index
    %c8 = arith.constant 8 : index
    %39 = vector.load %arg8[%c0_21, %c8] : memref<8x32xf32, #tpu.memory_space<vmem>>, vector<8x8xf32>
    %c0_22 = arith.constant 0 : index
    %c8_23 = arith.constant 8 : index
    %40 = vector.load %arg7[%c0_22, %c8_23] : memref<8x64xf32, #tpu.memory_space<vmem>>, vector<8x8xf32>
    %cst_24 = arith.constant dense<0.000000e+00> : vector<8x8xf32>
    %41 = tpu.matmul %39, %40, %cst_24 {dimension_numbers = #tpu.dot_dimension_numbers<[1], [1], [0], [0], [0, 0, 1, 0], [], []>} : vector<8x8xf32>, vector<8x8xf32>, vector<8x8xf32> -> vector<8x8xf32>
    %42 = arith.addf %41, %21 : vector<8x8xf32>
    %cst_25 = arith.constant dense<0xFF800000> : vector<8xf32>
    %43 = vector.multi_reduction <maximumf>, %42, %cst_25 [1] : vector<8x8xf32> to vector<8xf32>
    %44 = vector.shape_cast %43 : vector<8xf32> to vector<8x1xf32>
    %45 = vector.broadcast %44 : vector<8x1xf32> to vector<8x8xf32>
    %46 = arith.subf %42, %45 : vector<8x8xf32>
    %47 = math.exp %46 : vector<8x8xf32>
    %cst_26 = arith.constant dense<0.000000e+00> : vector<8xf32>
    %48 = vector.multi_reduction <add>, %47, %cst_26 [1] : vector<8x8xf32> to vector<8xf32>
    %49 = vector.shape_cast %48 : vector<8xf32> to vector<8x1xf32>
    %50 = tpu.reciprocal %49 : vector<8x1xf32> -> vector<8x1xf32>
    %51 = vector.broadcast %50 : vector<8x1xf32> to vector<8x8xf32>
    %52 = arith.mulf %47, %51 : vector<8x8xf32>
    %c0_27 = arith.constant 0 : index
    %c40 = arith.constant 40 : index
    %53 = vector.load %arg7[%c0_27, %c40] : memref<8x64xf32, #tpu.memory_space<vmem>>, vector<8x8xf32>
    %cst_28 = arith.constant dense<0.000000e+00> : vector<8x8xf32>
    %54 = tpu.matmul %52, %53, %cst_28 {dimension_numbers = #tpu.dot_dimension_numbers<[1], [0], [0], [1], [0, 0, 1, 1], [], []>} : vector<8x8xf32>, vector<8x8xf32>, vector<8x8xf32> -> vector<8x8xf32>
    %c0_29 = arith.constant 0 : index
    %c8_30 = arith.constant 8 : index
    %55 = vector.load %arg9[%c0_29, %c8_30] : memref<8x32xf32, #tpu.memory_space<vmem>>, vector<8x8xf32>
    tpu.vector_store %arg9[%c0_29, %c8_30], %54 {strides = array<i32>} : memref<8x32xf32, #tpu.memory_space<vmem>>, vector<8x8xf32>,
    %c0_31 = arith.constant 0 : index
    %c16 = arith.constant 16 : index
    %56 = vector.load %arg8[%c0_31, %c16] : memref<8x32xf32, #tpu.memory_space<vmem>>, vector<8x8xf32>
    %c0_32 = arith.constant 0 : index
    %c16_33 = arith.constant 16 : index
    %57 = vector.load %arg7[%c0_32, %c16_33] : memref<8x64xf32, #tpu.memory_space<vmem>>, vector<8x8xf32>
    %cst_34 = arith.constant dense<0.000000e+00> : vector<8x8xf32>
    %58 = tpu.matmul %56, %57, %cst_34 {dimension_numbers = #tpu.dot_dimension_numbers<[1], [1], [0], [0], [0, 0, 1, 0], [], []>} : vector<8x8xf32>, vector<8x8xf32>, vector<8x8xf32> -> vector<8x8xf32>
    %59 = arith.addf %58, %21 : vector<8x8xf32>
    %cst_35 = arith.constant dense<0xFF800000> : vector<8xf32>
    %60 = vector.multi_reduction <maximumf>, %59, %cst_35 [1] : vector<8x8xf32> to vector<8xf32>
    %61 = vector.shape_cast %60 : vector<8xf32> to vector<8x1xf32>
    %62 = vector.broadcast %61 : vector<8x1xf32> to vector<8x8xf32>
    %63 = arith.subf %59, %62 : vector<8x8xf32>
    %64 = math.exp %63 : vector<8x8xf32>
    %cst_36 = arith.constant dense<0.000000e+00> : vector<8xf32>
    %65 = vector.multi_reduction <add>, %64, %cst_36 [1] : vector<8x8xf32> to vector<8xf32>
    %66 = vector.shape_cast %65 : vector<8xf32> to vector<8x1xf32>
    %67 = tpu.reciprocal %66 : vector<8x1xf32> -> vector<8x1xf32>
    %68 = vector.broadcast %67 : vector<8x1xf32> to vector<8x8xf32>
    %69 = arith.mulf %64, %68 : vector<8x8xf32>
    %c0_37 = arith.constant 0 : index
    %c48 = arith.constant 48 : index
    %70 = vector.load %arg7[%c0_37, %c48] : memref<8x64xf32, #tpu.memory_space<vmem>>, vector<8x8xf32>
    %cst_38 = arith.constant dense<0.000000e+00> : vector<8x8xf32>
    %71 = tpu.matmul %69, %70, %cst_38 {dimension_numbers = #tpu.dot_dimension_numbers<[1], [0], [0], [1], [0, 0, 1, 1], [], []>} : vector<8x8xf32>, vector<8x8xf32>, vector<8x8xf32> -> vector<8x8xf32>
    %c0_39 = arith.constant 0 : index
    %c16_40 = arith.constant 16 : index
    %72 = vector.load %arg9[%c0_39, %c16_40] : memref<8x32xf32, #tpu.memory_space<vmem>>, vector<8x8xf32>
    tpu.vector_store %arg9[%c0_39, %c16_40], %71 {strides = array<i32>} : memref<8x32xf32, #tpu.memory_space<vmem>>, vector<8x8xf32>,
    %c0_41 = arith.constant 0 : index
    %c24 = arith.constant 24 : index
    %73 = vector.load %arg8[%c0_41, %c24] : memref<8x32xf32, #tpu.memory_space<vmem>>, vector<8x8xf32>
    %c0_42 = arith.constant 0 : index
    %c24_43 = arith.constant 24 : index
    %74 = vector.load %arg7[%c0_42, %c24_43] : memref<8x64xf32, #tpu.memory_space<vmem>>, vector<8x8xf32>
    %cst_44 = arith.constant dense<0.000000e+00> : vector<8x8xf32>
    %75 = tpu.matmul %73, %74, %cst_44 {dimension_numbers = #tpu.dot_dimension_numbers<[1], [1], [0], [0], [0, 0, 1, 0], [], []>} : vector<8x8xf32>, vector<8x8xf32>, vector<8x8xf32> -> vector<8x8xf32>
    %76 = arith.addf %75, %21 : vector<8x8xf32>
    %cst_45 = arith.constant dense<0xFF800000> : vector<8xf32>
    %77 = vector.multi_reduction <maximumf>, %76, %cst_45 [1] : vector<8x8xf32> to vector<8xf32>
    %78 = vector.shape_cast %77 : vector<8xf32> to vector<8x1xf32>
    %79 = vector.broadcast %78 : vector<8x1xf32> to vector<8x8xf32>
    %80 = arith.subf %76, %79 : vector<8x8xf32>
    %81 = math.exp %80 : vector<8x8xf32>
    %cst_46 = arith.constant dense<0.000000e+00> : vector<8xf32>
    %82 = vector.multi_reduction <add>, %81, %cst_46 [1] : vector<8x8xf32> to vector<8xf32>
    %83 = vector.shape_cast %82 : vector<8xf32> to vector<8x1xf32>
    %84 = tpu.reciprocal %83 : vector<8x1xf32> -> vector<8x1xf32>
    %85 = vector.broadcast %84 : vector<8x1xf32> to vector<8x8xf32>
    %86 = arith.mulf %81, %85 : vector<8x8xf32>
    %c0_47 = arith.constant 0 : index
    %c56 = arith.constant 56 : index
    %87 = vector.load %arg7[%c0_47, %c56] : memref<8x64xf32, #tpu.memory_space<vmem>>, vector<8x8xf32>
    %cst_48 = arith.constant dense<0.000000e+00> : vector<8x8xf32>
    %88 = tpu.matmul %86, %87, %cst_48 {dimension_numbers = #tpu.dot_dimension_numbers<[1], [0], [0], [1], [0, 0, 1, 1], [], []>} : vector<8x8xf32>, vector<8x8xf32>, vector<8x8xf32> -> vector<8x8xf32>
    %c0_49 = arith.constant 0 : index
    %c24_50 = arith.constant 24 : index
    %89 = vector.load %arg9[%c0_49, %c24_50] : memref<8x32xf32, #tpu.memory_space<vmem>>, vector<8x8xf32>
    tpu.vector_store %arg9[%c0_49, %c24_50], %88 {strides = array<i32>} : memref<8x32xf32, #tpu.memory_space<vmem>>, vector<8x8xf32>,
    %c0_51 = arith.constant 0 : index
    %c0_52 = arith.constant 0 : index
    %90 = vector.load %arg9[%c0_51, %c0_52] : memref<8x32xf32, #tpu.memory_space<vmem>>, vector<8x32xf32>
    %c0_53 = arith.constant 0 : index
    %c0_54 = arith.constant 0 : index
    %91 = vector.load %arg4[%c0_53, %c0_54] : memref<32x32xf32, #tpu.memory_space<vmem>>, vector<32x32xf32>
    %cst_55 = arith.constant dense<0.000000e+00> : vector<8x32xf32>
    %92 = tpu.matmul %90, %91, %cst_55 {dimension_numbers = #tpu.dot_dimension_numbers<[1], [0], [0], [1], [0, 0, 1, 1], [], []>} : vector<8x32xf32>, vector<32x32xf32>, vector<8x32xf32> -> vector<8x32xf32>
    %c0_56 = arith.constant 0 : index
    %c0_57 = arith.constant 0 : index
    %93 = vector.load %arg5[%c0_56, %c0_57] : memref<1x32xf32, #tpu.memory_space<vmem>>, vector<1x32xf32>
    %94 = vector.broadcast %93 : vector<1x32xf32> to vector<8x32xf32>
    %95 = arith.addf %92, %94 : vector<8x32xf32>
    %c0_58 = arith.constant 0 : index
    %c0_59 = arith.constant 0 : index
    %c0_60 = arith.constant 0 : index
    %96 = vector.load %arg6[%c0_58, %c0_59, %c0_60] : memref<1x8x32xf32, #tpu.memory_space<vmem>>, vector<1x8x32xf32>
    %97 = vector.shape_cast %96 : vector<1x8x32xf32> to vector<8x32xf32>
    %98 = vector.shape_cast %95 : vector<8x32xf32> to vector<1x8x32xf32>
    tpu.vector_store %arg6[%c0_58, %c0_59, %c0_60], %98 {strides = array<i32>} : memref<1x8x32xf32, #tpu.memory_space<vmem>>, vector<1x8x32xf32>,
    return
  }
  func.func @transform_0(%arg0: i32, %arg1: i32) -> (i32, i32, i32) {
    %c0_i32 = arith.constant 0 : i32
    %c0_i32_0 = arith.constant 0 : i32
    %c0_i32_1 = arith.constant 0 : i32
    return %arg0, %c0_i32, %c0_i32_0 : i32, i32, i32
  }
  func.func @transform_1(%arg0: i32, %arg1: i32) -> (i32, i32) {
    %c0_i32 = arith.constant 0 : i32
    %c0_i32_0 = arith.constant 0 : i32
    %c0_i32_1 = arith.constant 0 : i32
    return %c0_i32, %c0_i32_0 : i32, i32
  }
  func.func @transform_2(%arg0: i32, %arg1: i32) -> (i32, i32) {
    %c0_i32 = arith.constant 0 : i32
    %c0_i32_0 = arith.constant 0 : i32
    %c0_i32_1 = arith.constant 0 : i32
    return %c0_i32, %c0_i32_0 : i32, i32
  }
  func.func @transform_3(%arg0: i32, %arg1: i32) -> (i32, i32) {
    %c0_i32 = arith.constant 0 : i32
    %c0_i32_0 = arith.constant 0 : i32
    %c0_i32_1 = arith.constant 0 : i32
    return %c0_i32, %c0_i32_0 : i32, i32
  }
  func.func @transform_4(%arg0: i32, %arg1: i32) -> (i32, i32, i32) {
    %c0_i32 = arith.constant 0 : i32
    %c0_i32_0 = arith.constant 0 : i32
    return %arg0, %arg1, %c0_i32 : i32, i32, i32
  }
}

</mosaic_0001>

<llo_original>
// kernel: tpu_custom_call.1
$region0: #{tpu_custom_call.1}
  #allocation0 [shape = 'u32[]', space=smem, size = 0x4, offset = 0x4, fixed_abs, tag = 'smem constant byte address 0x4 - core index']
  #allocation1 [shape = 'u32[144,128]{1,0:T(1,128)}', space=vmem, size = 0x12000, scoped, tag = 'internal scratch']
  #allocation2 [shape = 'f32[8,64]{1,0:T(8,128)}', space=vmem, size = 0x1000, scoped, tag = 'scratch operand']
  #allocation3 [shape = 'f32[8,32]{1,0:T(8,128)}', space=vmem, size = 0x1000, scoped, tag = 'scratch operand']
  #allocation4 [shape = 'f32[8,32]{1,0:T(8,128)}', space=vmem, size = 0x1000, scoped, tag = 'scratch operand']
  %s0 = inlined_call_operand.hbm [shape: f32[2,8,32], index: 0, kind: input, shape index: {}]
  %s1 = inlined_call_operand.hbm [shape: f32[32,96], index: 1, kind: input, shape index: {}]
  %s2 = inlined_call_operand.hbm [shape: f32[32,32], index: 2, kind: input, shape index: {}]
  %s3 = inlined_call_operand.vmem [shape: f32[1,32], index: 3, kind: input, shape index: {}]
  %s4 = inlined_call_operand.hbm [shape: f32[2,8,32], index: 4, kind: output, shape index: {}]
  %s5 = sld [smem:[#allocation0]]
  $region65: #{tpu_custom_call.1} parent=0
    _
  %s7 = ssub.s32 1, %s5
  %s8 = scalar_select 0, %s7, %s5
  $region1: #{tpu_custom_call.1} parent=0
    #allocation5 [shape = 'u8[8192]{0}', space=vmem, size = 0x2000, scoped, tag = 'input window, operand 0']
    #allocation6 [shape = 's32[2]{0}', space=sflag, size = 0x8, scoped, tag = 'scoped memory for tpu_custom_call.1']
    #allocation7 [shape = 's32[2]{0}', space=sflag, size = 0x8, scoped, tag = 'scoped memory for tpu_custom_call.1']
    #allocation8 [shape = 'u8[16384]{0}', space=vmem, size = 0x4000, scoped, tag = 'input window, operand 1, single buffered']
    #allocation9 [shape = 's32[1]{0}', space=sflag, size = 0x4, scoped, tag = 'scoped memory for tpu_custom_call.1']
    #allocation10 [shape = 'u8[16384]{0}', space=vmem, size = 0x4000, scoped, tag = 'input window, operand 2, single buffered']
    #allocation11 [shape = 'u8[8192]{0}', space=vmem, size = 0x2000, scoped, tag = 'output window, operand 0']
    %9 = vsyncpa [#allocation6], 0
    %s10 = scalar_lea.sflag [#allocation6], 1
    %11 = vsyncpa %s10, 0
    %12 = vsyncpa [#allocation9], 0
    %13 = vsyncpa [#allocation7], 0
    %s14 = scalar_lea.sflag [#allocation7], 1
    %15 = vsyncpa %s14, 0
    loop: start=0, step=1, limit=4
    $region2: #{tpu_custom_call.1} parent=1 // loop_pre_header
      _
    $region3: #{tpu_custom_call.1} parent=1 // loop_header
      %s17 = sphi 0, %s21
      %p18 = scmp.ge.s32.totalorder %s17, 4
      %s24 = sphi 0, %s36
      %s25 = sphi 0, %s32
      %s26 = sphi 0, %s24
      %s27 = sphi 0, %s25
      %s28 = sphi 0, %s26
      %s29 = sphi 0, %s27
      %s39 = sphi 0, %s41
      %s42 = sphi 0, %s39
      %s43 = sphi 0, %s42
      %s59 = sphi 0, %s43
      %s63 = sphi 0, %s63
      %s65 = sphi 0, %s63
      %s66 = sphi 0, %s65
      %s80 = sphi 0, %s66
      %s84 = sphi 0, %s84
      %s86 = sphi 0, %s84
      %s87 = sphi 0, %s86
      %s101 = sphi 0, %s87
      %s105 = sphi 0, %s105
      %s107 = sphi 0, %s105
      %s108 = sphi 0, %s107
      %s122 = sphi 0, %s108
      %s130 = sphi 0, %s132
      %s133 = sphi 0, %s130
      %s134 = sphi 0, %s133
      %s150 = sphi 0, %s134
    $region4: #{tpu_custom_call.1} parent=1 // loop_header_branch
      %20 = sbr.rel (%p18) target = $region8
    $region5: #{tpu_custom_call.1} parent=1 // loop_body
      %s22 = ssub.s32 %s17, 1
      %s23 = ssub.s32 %s17, 2
      %s30 = sadd.s32 1, %s25
      %p31 = scmp.ge.s32.totalorder %s30, 1
      %s32 = scalar_select %p31, 0, %s30
      %s33 = sadd.s32 1, %s24
      %s34 = scalar_select %p31, %s33, %s24
      %p35 = scmp.ge.s32.totalorder %s34, 2
      %s36 = scalar_select %p35, 0, %s34
      %s37 = ssub.s32 %s24, %s36
      %p38 = scmp.eq.s32.totalorder %s37, 0
      %s40 = sadd.s32 %s39, 1
      %s41 = scalar_select %p38, %s39, %s40
      %p44 = pneg %p38
      %p45 = scmp.eq.s32.totalorder %s17, 1
      %p46 = por %p44, %p45
      %p47 = scmp.ne.s32.totalorder %s39, %s42
      %p48 = scmp.eq.s32.totalorder %s17, 0
      %p49 = por %p47, %p48
      %p50 = scmp.ne.s32.totalorder %s39, %s42
      %p51 = scmp.eq.s32.totalorder %s22, 1
      %p52 = por %p50, %p51
      %p53 = scmp.ne.s32.totalorder %s42, %s43
      %p54 = scmp.eq.s32.totalorder %s22, 0
      %p55 = por %p53, %p54
      %p56 = scmp.ne.s32.totalorder %s42, %s43
      %p57 = scmp.eq.s32.totalorder %s23, 1
      %p58 = por %p56, %p57
      %p60 = scmp.ne.s32.totalorder %s43, %s59
      %p61 = scmp.eq.s32.totalorder %s23, 0
      %p62 = por %p60, %p61
      %s64 = sadd.s32 %s63, 1
      %p67 = scmp.eq.s32.totalorder %s17, 1
      %p68 = scmp.ne.s32.totalorder %s63, %s65
      %p69 = scmp.eq.s32.totalorder %s17, 0
      %p70 = por %p68, %p69
      %p71 = scmp.ne.s32.totalorder %s63, %s65
      %p72 = scmp.eq.s32.totalorder %s22, 1
      %p73 = por %p71, %p72
      %p74 = scmp.ne.s32.totalorder %s65, %s66
      %p75 = scmp.eq.s32.totalorder %s22, 0
      %p76 = por %p74, %p75
      %p77 = scmp.ne.s32.totalorder %s65, %s66
      %p78 = scmp.eq.s32.totalorder %s23, 1
      %p79 = por %p77, %p78
      %p81 = scmp.ne.s32.totalorder %s66, %s80
      %p82 = scmp.eq.s32.totalorder %s23, 0
      %p83 = por %p81, %p82
      %s85 = sadd.s32 %s84, 1
      %p88 = scmp.eq.s32.totalorder %s17, 1
      %p89 = scmp.ne.s32.totalorder %s84, %s86
      %p90 = scmp.eq.s32.totalorder %s17, 0
      %p91 = por %p89, %p90
      %p92 = scmp.ne.s32.totalorder %s84, %s86
      %p93 = scmp.eq.s32.totalorder %s22, 1
      %p94 = por %p92, %p93
      %p95 = scmp.ne.s32.totalorder %s86, %s87
      %p96 = scmp.eq.s32.totalorder %s22, 0
      %p97 = por %p95, %p96
      %p98 = scmp.ne.s32.totalorder %s86, %s87
      %p99 = scmp.eq.s32.totalorder %s23, 1
      %p100 = por %p98, %p99
      %p102 = scmp.ne.s32.totalorder %s87, %s101
      %p103 = scmp.eq.s32.totalorder %s23, 0
      %p104 = por %p102, %p103
      %s106 = sadd.s32 %s105, 1
      %p109 = scmp.eq.s32.totalorder %s17, 1
      %p110 = scmp.ne.s32.totalorder %s105, %s107
      %p111 = scmp.eq.s32.totalorder %s17, 0
      %p112 = por %p110, %p111
      %p113 = scmp.ne.s32.totalorder %s105, %s107
      %p114 = scmp.eq.s32.totalorder %s22, 1
      %p115 = por %p113, %p114
      %p116 = scmp.ne.s32.totalorder %s107, %s108
      %p117 = scmp.eq.s32.totalorder %s22, 0
      %p118 = por %p116, %p117
      %p119 = scmp.ne.s32.totalorder %s107, %s108
      %p120 = scmp.eq.s32.totalorder %s23, 1
      %p121 = por %p119, %p120
      %p123 = scmp.ne.s32.totalorder %s108, %s122
      %p124 = scmp.eq.s32.totalorder %s23, 0
      %p125 = por %p123, %p124
      %s126 = ssub.s32 %s24, %s36
      %s127 = ssub.s32 %s25, %s32
      %s128 = sor.u32 %s126, %s127
      %p129 = scmp.eq.s32.totalorder %s128, 0
      %s131 = sadd.s32 %s130, 1
      %s132 = scalar_select %p129, %s130, %s131
      %p135 = pneg %p129
      %p136 = scmp.eq.s32.totalorder %s17, 1
      %p137 = por %p135, %p136
      %p138 = scmp.ne.s32.totalorder %s130, %s133
      %p139 = scmp.eq.s32.totalorder %s17, 0
      %p140 = por %p138, %p139
      %p141 = scmp.ne.s32.totalorder %s130, %s133
      %p142 = scmp.eq.s32.totalorder %s22, 1
      %p143 = por %p141, %p142
      %p144 = scmp.ne.s32.totalorder %s133, %s134
      %p145 = scmp.eq.s32.totalorder %s22, 0
      %p146 = por %p144, %p145
      %p147 = scmp.ne.s32.totalorder %s133, %s134
      %p148 = scmp.eq.s32.totalorder %s23, 1
      %p149 = por %p147, %p148
      %p151 = scmp.ne.s32.totalorder %s134, %s150
      %p152 = scmp.eq.s32.totalorder %s23, 0
      %p153 = por %p151, %p152
      %p154 = scmp.le.s32.totalorder 1, %s17
      %p155 = scmp.lt.s32.totalorder %s17, 3
      %p156 = pnand %p154, %p155
      %p157 = pneg %p156
      // Predicated region
      $region9: #{tpu_custom_call.1} parent=5 // pred_check
        _
      $region10: #{tpu_custom_call.1} parent=5 // pred_check_branch
        %159 = sbr.rel (%p156) target = $region12
      $region11: #{tpu_custom_call.1} parent=5 // pred_region
        %s160 = ssub.s32 %s17, 1
        // Predicated region
        $region13: #{tpu_custom_call.1} parent=11 // pred_check
          %p161 = pneg %p76
        $region14: #{tpu_custom_call.1} parent=11 // pred_check_branch
          %163 = sbr.rel (%p161) target = $region16
        $region15: #{tpu_custom_call.1} parent=11 // pred_region
          %s165 = ssub.s32 512, 512
          %166 = vsyncadd [#allocation9], %s165
          %s167 = sshll.u32 [#allocation8], 4
          %s168 = int_to_ptr.vmem [resolvable:$true] %s167
          %173 = dma.hbm_to_vmem [thread:$0]  %s1, 512, %s168, [#allocation9], 128, 128, 8
        $region16: #{tpu_custom_call.1} parent=11 // pred_fallthru
          _
        // Predicated region
        $region17: #{tpu_custom_call.1} parent=11 // pred_check
          %p174 = pneg %p97
        $region18: #{tpu_custom_call.1} parent=11 // pred_check_branch
          %176 = sbr.rel (%p174) target = $region20
        $region19: #{tpu_custom_call.1} parent=11 // pred_region
          %s178 = ssub.s32 512, 512
          %179 = vsyncadd [#allocation9], %s178
          %s180 = sshll.u32 [#allocation10], 4
          %s181 = int_to_ptr.vmem [resolvable:$true] %s180
          %186 = dma.hbm_to_vmem [thread:$0]  %s2, 512, %s181, [#allocation9], 128, 128, 8
        $region20: #{tpu_custom_call.1} parent=11 // pred_fallthru
          _
        // Predicated region
        $region21: #{tpu_custom_call.1} parent=11 // pred_check
          %p187 = pneg %p118
        $region22: #{tpu_custom_call.1} parent=11 // pred_check_branch
          %189 = sbr.rel (%p187) target = $region24
        $region23: #{tpu_custom_call.1} parent=11 // pred_region
          _
        $region24: #{tpu_custom_call.1} parent=11 // pred_fallthru
          _
      $region12: #{tpu_custom_call.1} parent=5 // pred_fallthru
        _
      %p190 = scmp.lt.s32.totalorder %s17, 2
      // Predicated region
      $region25: #{tpu_custom_call.1} parent=5 // pred_check
        %p191 = pneg %p190
      $region26: #{tpu_custom_call.1} parent=5 // pred_check_branch
        %193 = sbr.rel (%p191) target = $region28
      $region27: #{tpu_custom_call.1} parent=5 // pred_region
        // Predicated region
        $region29: #{tpu_custom_call.1} parent=27 // pred_check
          %p194 = pneg %p49
        $region30: #{tpu_custom_call.1} parent=27 // pred_check_branch
          %196 = sbr.rel (%p194) target = $region32
        $region31: #{tpu_custom_call.1} parent=27 // pred_region
          %s197 = sand.u32 %s39, 1
          %s198 = scalar_lea.sflag [#allocation6], %s197
          %s199 = sand.u32 %s39, 1
          %s200 = smul.addr %s199, 8
          %s201 = scalar_lea.vmem [#allocation5], %s200
          %s203 = ssub.s32 128, 128
          %204 = vsyncadd %s198, %s203
          %s205 = smul.addr %s24, 128
          %s206 = scalar_lea.hbm %s0, %s205
          %s208 = sshll.u32 %s201, 4
          %s209 = int_to_ptr.vmem [resolvable:$true] %s208
          %211 = dma.hbm_to_vmem [thread:$0]  %s206, 128, %s209, %s198
        $region32: #{tpu_custom_call.1} parent=27 // pred_fallthru
          _
      $region28: #{tpu_custom_call.1} parent=5 // pred_fallthru
        _
      %p212 = scmp.le.s32.totalorder 1, %s17
      %p213 = scmp.lt.s32.totalorder %s17, 3
      %p214 = pnand %p212, %p213
      %p215 = pneg %p214
      // Predicated region
      $region33: #{tpu_custom_call.1} parent=5 // pred_check
        _
      $region34: #{tpu_custom_call.1} parent=5 // pred_check_branch
        %217 = sbr.rel (%p214) target = $region36
      $region35: #{tpu_custom_call.1} parent=5 // pred_region
        %s218 = ssub.s32 %s17, 1
        %s219 = sand.u32 %s42, 1
        %s220 = scalar_lea.sflag [#allocation6], %s219
        %s221 = sand.u32 %s42, 1
        %s222 = smul.addr %s221, 8
        %s223 = scalar_lea.vmem [#allocation5], %s222
        // Predicated region
        $region37: #{tpu_custom_call.1} parent=35 // pred_check
          %p224 = pneg %p55
        $region38: #{tpu_custom_call.1} parent=35 // pred_check_branch
          %226 = sbr.rel (%p224) target = $region40
        $region39: #{tpu_custom_call.1} parent=35 // pred_region
          %227 = dma.done %s220, 128
        $region40: #{tpu_custom_call.1} parent=35 // pred_fallthru
          _
        // Predicated region
        $region41: #{tpu_custom_call.1} parent=35 // pred_check
          %p228 = pneg %p76
        $region42: #{tpu_custom_call.1} parent=35 // pred_check_branch
          %230 = sbr.rel (%p228) target = $region44
        $region43: #{tpu_custom_call.1} parent=35 // pred_region
          %231 = dma.done [#allocation9], 512
        $region44: #{tpu_custom_call.1} parent=35 // pred_fallthru
          _
        // Predicated region
        $region45: #{tpu_custom_call.1} parent=35 // pred_check
          %p232 = pneg %p97
        $region46: #{tpu_custom_call.1} parent=35 // pred_check_branch
          %234 = sbr.rel (%p232) target = $region48
        $region47: #{tpu_custom_call.1} parent=35 // pred_region
          %235 = dma.done [#allocation9], 512
        $region48: #{tpu_custom_call.1} parent=35 // pred_fallthru
          _
        %s236 = sand.u32 %s42, 1
        %s237 = scalar_lea.sflag [#allocation6], %s236
        %s238 = sand.u32 %s42, 1
        %s239 = smul.addr %s238, 8
        %s240 = scalar_lea.vmem [#allocation5], %s239
        %p241 = pneg %p55
        %p242 = pneg %p52
        %p243 = pneg %p76
        %p244 = pneg %p73
        %p245 = pneg %p97
        %p246 = pneg %p94
        %p247 = pneg %p118
        %p248 = pneg %p115
        %p249 = pneg %p146
        %p250 = pneg %p143
        %s251 = sand.u32 %s133, 1
        %s252 = scalar_lea.sflag [#allocation7], %s251
        %s253 = sand.u32 %s133, 1
        %s254 = smul.addr %s253, 8
        %s255 = scalar_lea.vmem [#allocation11], %s254
        %p256 = scmp.eq.s32.totalorder %s27, 0
        // Predicated region
        $region49: #{tpu_custom_call.1} parent=35 // pred_check
          %p257 = pneg %p256
        $region50: #{tpu_custom_call.1} parent=35 // pred_check_branch
          %259 = sbr.rel (%p257) target = $region52
        $region51: #{tpu_custom_call.1} parent=35 // pred_region
          %v260 = vld [vmem:[%s223] sm:$0xff]
          %v261 = vld [vmem:[#allocation8] sm:$0xff]
          %v262 = vld [vmem:[#allocation8 + $0x8] sm:$0xff]
          %v263 = vld [vmem:[#allocation8 + $0x10] sm:$0xff]
          %v264 = vld [vmem:[#allocation8 + $0x18] sm:$0xff]
          %269 = vrot.lane.b32.xlu0 %v261, 96
          %v270 = vpop.permute.xlu0 %269
          %271 = vrot.lane.b32.xlu0 %v262, 96
          %v272 = vpop.permute.xlu0 %271
          %273 = vrot.lane.b32.xlu0 %v263, 96
          %v274 = vpop.permute.xlu0 %273
          %275 = vrot.lane.b32.xlu0 %v264, 96
          %v276 = vpop.permute.xlu0 %275
          %vm281 = vcmask 261120
          %v283 = vsel %vm281, %v260, 0
          %285 = vmatprep.subr.mxu0 0.0
          %286 = vmatpush1.msra.mxu0 0.0
          %287 = vmatprep.subr.mxu0 0.0
          %288 = vmatpush1.msra.mxu0 0.0
          %289 = vmatprep.subr.mxu0 0.0
          %290 = vmatpush1.msra.mxu0 0.0
          %291 = vmatprep.subr.mxu0 0.0
          %292 = vmatpush1.msra.mxu0 0.0
          %293 = vmatprep.subr.mxu0 0.0
          %294 = vmatpush1.msra.mxu0 0.0
          %295 = vmatprep.subr.mxu0 0.0
          %296 = vmatpush1.msra.mxu0 0.0
          %297 = vmatprep.subr.mxu0 0.0
          %298 = vmatpush1.msra.mxu0 0.0
          %299 = vmatprep.subr.mxu0 0.0
          %300 = vmatpush1.msra.mxu0 0.0
          %301 = vmatprep.subr.mxu0 0.0
          %302 = vmatpush1.msra.mxu0 0.0
          %303 = vmatprep.subr.mxu0 0.0
          %304 = vmatpush1.msra.mxu0 0.0
          %305 = vmatprep.subr.mxu0 0.0
          %306 = vmatpush1.msra.mxu0 0.0
          %307 = vmatprep.subr.mxu0 0.0
          %308 = vmatpush1.msra.mxu0 0.0
          %309 = vmatprep.subr.mxu0 0.0
          %310 = vmatpush1.msra.mxu0 %v276
          %311 = vmatprep.subr.mxu0 0.0
          %312 = vmatpush1.msra.mxu0 %v274
          %313 = vmatprep.subr.mxu0 0.0
          %314 = vmatpush1.msra.mxu0 %v272
          %315 = vmatprep.subr.mxu0 0.0
          %316 = vmatpush1.msra.mxu0 %v270
          %317 = vmatprep.subr.mxu0 0.0
          %318 = vmatpush2.msra.mxu0 0.0
          %319 = vmatprep.subr.mxu0 0.0
          %320 = vmatpush2.msra.mxu0 0.0
          %321 = vmatprep.subr.mxu0 0.0
          %322 = vmatpush2.msra.mxu0 0.0
          %323 = vmatprep.subr.mxu0 0.0
          %324 = vmatpush2.msra.mxu0 0.0
          %325 = vmatprep.subr.mxu0 0.0
          %326 = vmatpush2.msra.mxu0 0.0
          %327 = vmatprep.subr.mxu0 0.0
          %328 = vmatpush2.msra.mxu0 0.0
          %329 = vmatprep.subr.mxu0 0.0
          %330 = vmatpush2.msra.mxu0 0.0
          %331 = vmatprep.subr.mxu0 0.0
          %332 = vmatpush2.msra.mxu0 0.0
          %333 = vmatprep.subr.mxu0 0.0
          %334 = vmatpush2.msra.mxu0 0.0
          %335 = vmatprep.subr.mxu0 0.0
          %336 = vmatpush2.msra.mxu0 0.0
          %337 = vmatprep.subr.mxu0 0.0
          %338 = vmatpush2.msra.mxu0 0.0
          %339 = vmatprep.subr.mxu0 0.0
          %340 = vmatpush2.msra.mxu0 0.0
          %341 = vmatprep.subr.mxu0 0.0
          %342 = vmatpush2.msra.mxu0 0.0
          %343 = vmatprep.subr.mxu0 0.0
          %344 = vmatpush2.msra.mxu0 0.0
          %345 = vmatprep.subr.mxu0 0.0
          %346 = vmatpush2.msra.mxu0 0.0
          %347 = vmatprep.subr.mxu0 0.0
          %348 = vmatpush2.msra.mxu0 0.0
          %349 = vmatprep.mubr.f32.mxu0 0.0
          %350 = vmatmul.mubr.f32.gmra.mxu0 %v283
          %v351 = vpop.f32.mrf.mxu0
          %v352 = vadd.f32 0.0, %v351
          %v353 = vpop.f32.mrf.mxu0
          %354 = vdwg.mxu0
          %vm355 = vcmask 523264
          %356 = vst.msk [vmem:[#allocation2] sm:$0xff] %vm355, %v352
        $region52: #{tpu_custom_call.1} parent=35 // pred_fallthru
          _
        %s357 = smul.u32 %s27, 8
        %s358 = scalar_lea.vmem %s223, %s357 [#allocation5]
        %v359 = vld [vmem:[%s358] sm:$0xff]
        %v360 = vld [vmem:[#allocation8] sm:$0xff]
        %v361 = vld [vmem:[#allocation8 + $0x8] sm:$0xff]
        %v362 = vld [vmem:[#allocation8 + $0x10] sm:$0xff]
        %v363 = vld [vmem:[#allocation8 + $0x18] sm:$0xff]
        %vm364 = vcmask 261120
        %v366 = vsel %vm364, %v359, 0
        %368 = vmatprep.subr.mxu0 0.0
        %369 = vmatpush1.msra.mxu0 0.0
        %370 = vmatprep.subr.mxu0 0.0
        %371 = vmatpush1.msra.mxu0 0.0
        %372 = vmatprep.subr.mxu0 0.0
        %373 = vmatpush1.msra.mxu0 0.0
        %374 = vmatprep.subr.mxu0 0.0
        %375 = vmatpush1.msra.mxu0 0.0
        %376 = vmatprep.subr.mxu0 0.0
        %377 = vmatpush1.msra.mxu0 0.0
        %378 = vmatprep.subr.mxu0 0.0
        %379 = vmatpush1.msra.mxu0 0.0
        %380 = vmatprep.subr.mxu0 0.0
        %381 = vmatpush1.msra.mxu0 0.0
        %382 = vmatprep.subr.mxu0 0.0
        %383 = vmatpush1.msra.mxu0 0.0
        %384 = vmatprep.subr.mxu0 0.0
        %385 = vmatpush1.msra.mxu0 0.0
        %386 = vmatprep.subr.mxu0 0.0
        %387 = vmatpush1.msra.mxu0 0.0
        %388 = vmatprep.subr.mxu0 0.0
        %389 = vmatpush1.msra.mxu0 0.0
        %390 = vmatprep.subr.mxu0 0.0
        %391 = vmatpush1.msra.mxu0 0.0
        %392 = vmatprep.subr.mxu0 0.0
        %393 = vmatpush1.msra.mxu0 %v363
        %394 = vmatprep.subr.mxu0 0.0
        %395 = vmatpush1.msra.mxu0 %v362
        %396 = vmatprep.subr.mxu0 0.0
        %397 = vmatpush1.msra.mxu0 %v361
        %398 = vmatprep.subr.mxu0 0.0
        %399 = vmatpush1.msra.mxu0 %v360
        %400 = vmatprep.subr.mxu0 0.0
        %401 = vmatpush2.msra.mxu0 0.0
        %402 = vmatprep.subr.mxu0 0.0
        %403 = vmatpush2.msra.mxu0 0.0
        %404 = vmatprep.subr.mxu0 0.0
        %405 = vmatpush2.msra.mxu0 0.0
        %406 = vmatprep.subr.mxu0 0.0
        %407 = vmatpush2.msra.mxu0 0.0
        %408 = vmatprep.subr.mxu0 0.0
        %409 = vmatpush2.msra.mxu0 0.0
        %410 = vmatprep.subr.mxu0 0.0
        %411 = vmatpush2.msra.mxu0 0.0
        %412 = vmatprep.subr.mxu0 0.0
        %413 = vmatpush2.msra.mxu0 0.0
        %414 = vmatprep.subr.mxu0 0.0
        %415 = vmatpush2.msra.mxu0 0.0
        %416 = vmatprep.subr.mxu0 0.0
        %417 = vmatpush2.msra.mxu0 0.0
        %418 = vmatprep.subr.mxu0 0.0
        %419 = vmatpush2.msra.mxu0 0.0
        %420 = vmatprep.subr.mxu0 0.0
        %421 = vmatpush2.msra.mxu0 0.0
        %422 = vmatprep.subr.mxu0 0.0
        %423 = vmatpush2.msra.mxu0 0.0
        %424 = vmatprep.subr.mxu0 0.0
        %425 = vmatpush2.msra.mxu0 0.0
        %426 = vmatprep.subr.mxu0 0.0
        %427 = vmatpush2.msra.mxu0 0.0
        %428 = vmatprep.subr.mxu0 0.0
        %429 = vmatpush2.msra.mxu0 0.0
        %430 = vmatprep.subr.mxu0 0.0
        %431 = vmatpush2.msra.mxu0 0.0
        %432 = vmatprep.mubr.f32.mxu0 0.0
        %433 = vmatmul.mubr.f32.gmra.mxu0 %v366
        %v434 = vpop.f32.mrf.mxu0
        %v435 = vadd.f32 0.0, %v434
        %v436 = vpop.f32.mrf.mxu0
        %437 = vdwg.mxu0
        %v438 = vmul.f32 %v435, 0.35355338
        %439 = vst.msk [vmem:[#allocation3] sm:$0xff] %vm364, %v438
        %v440 = vlaneseq
        %v441 = vshrl.u32 %v440, 7
        %v442 = vstv %s357
        %v443 = vadd.s32 %v442, %v441
        %v444 = vlaneseq
        %v445 = vand.u32 %v444, 127
        %vm446 = vcmp.le.s32.totalorder %v445, %v443
        %v447 = vsel %vm446, 0.0, -1e+30
        %v448 = vld [vmem:[#allocation3] sm:$0xff]
        %v449 = vld [vmem:[#allocation2] sm:$0xff]
        %vm450 = vcmask 64512
        %v452 = vsel %vm450, %v448, 0
        %v455 = vsel %vm450, %v449, 0
        %457 = vmatprep.subr.mxu0 0.0
        %458 = vmatpush1.xpose.msra.mxu0 0.0
        %459 = vmatprep.subr.mxu0 0.0
        %460 = vmatpush1.xpose.msra.mxu0 0.0
        %461 = vmatprep.subr.mxu0 0.0
        %462 = vmatpush1.xpose.msra.mxu0 0.0
        %463 = vmatprep.subr.mxu0 0.0
        %464 = vmatpush1.xpose.msra.mxu0 0.0
        %465 = vmatprep.subr.mxu0 0.0
        %466 = vmatpush1.xpose.msra.mxu0 0.0
        %467 = vmatprep.subr.mxu0 0.0
        %468 = vmatpush1.xpose.msra.mxu0 0.0
        %469 = vmatprep.subr.mxu0 0.0
        %470 = vmatpush1.xpose.msra.mxu0 0.0
        %471 = vmatprep.subr.mxu0 0.0
        %472 = vmatpush1.xpose.msra.mxu0 0.0
        %473 = vmatprep.subr.mxu0 0.0
        %474 = vmatpush1.xpose.msra.mxu0 0.0
        %475 = vmatprep.subr.mxu0 0.0
        %476 = vmatpush1.xpose.msra.mxu0 0.0
        %477 = vmatprep.subr.mxu0 0.0
        %478 = vmatpush1.xpose.msra.mxu0 0.0
        %479 = vmatprep.subr.mxu0 0.0
        %480 = vmatpush1.xpose.msra.mxu0 0.0
        %481 = vmatprep.subr.mxu0 0.0
        %482 = vmatpush1.xpose.msra.mxu0 0.0
        %483 = vmatprep.subr.mxu0 0.0
        %484 = vmatpush1.xpose.msra.mxu0 0.0
        %485 = vmatprep.subr.mxu0 0.0
        %486 = vmatpush1.xpose.msra.mxu0 0.0
        %487 = vmatprep.subr.mxu0 0.0
        %488 = vmatpush1.xpose.msra.mxu0 %v455
        %489 = vmatprep.subr.mxu0 0.0
        %490 = vmatpush2.xpose.msra.mxu0 0.0
        %491 = vmatprep.subr.mxu0 0.0
        %492 = vmatpush2.xpose.msra.mxu0 0.0
        %493 = vmatprep.subr.mxu0 0.0
        %494 = vmatpush2.xpose.msra.mxu0 0.0
        %495 = vmatprep.subr.mxu0 0.0
        %496 = vmatpush2.xpose.msra.mxu0 0.0
        %497 = vmatprep.subr.mxu0 0.0
        %498 = vmatpush2.xpose.msra.mxu0 0.0
        %499 = vmatprep.subr.mxu0 0.0
        %500 = vmatpush2.xpose.msra.mxu0 0.0
        %501 = vmatprep.subr.mxu0 0.0
        %502 = vmatpush2.xpose.msra.mxu0 0.0
        %503 = vmatprep.subr.mxu0 0.0
        %504 = vmatpush2.xpose.msra.mxu0 0.0
        %505 = vmatprep.subr.mxu0 0.0
        %506 = vmatpush2.xpose.msra.mxu0 0.0
        %507 = vmatprep.subr.mxu0 0.0
        %508 = vmatpush2.xpose.msra.mxu0 0.0
        %509 = vmatprep.subr.mxu0 0.0
        %510 = vmatpush2.xpose.msra.mxu0 0.0
        %511 = vmatprep.subr.mxu0 0.0
        %512 = vmatpush2.xpose.msra.mxu0 0.0
        %513 = vmatprep.subr.mxu0 0.0
        %514 = vmatpush2.xpose.msra.mxu0 0.0
        %515 = vmatprep.subr.mxu0 0.0
        %516 = vmatpush2.xpose.msra.mxu0 0.0
        %517 = vmatprep.subr.mxu0 0.0
        %518 = vmatpush2.xpose.msra.mxu0 0.0
        %519 = vmatprep.subr.mxu0 0.0
        %520 = vmatpush2.xpose.msra.mxu0 0.0
        %521 = vmatprep.mubr.f32.mxu0 0.0
        %522 = vmatmul.mubr.f32.gmra.mxu0 %v452
        %v523 = vpop.f32.mrf.mxu0
        %v524 = vadd.f32 %v447, %v523
        %v525 = vpop.f32.mrf.mxu0
        %526 = vdwg.mxu0
        %v527 = vsel %vm450, %v524, -inf
        %528 = vmax.xlane.f32.xlu0 %v527
        %v529 = vpop.xlane.xlu0 %528
        %v530 = vsub.f32 %v524, %v529
        %v531 = vmul.f32 %v530, 1.442695
        %v532 = vpow.pop %v531
        %v533 = vsel %vm450, %v532, 0.0
        %534 = vadd.xlane.f32.xlu0 %v533
        %v535 = vpop.xlane.xlu0 %534
        %v536 = vrcp.pop %v535
        %v537 = vmul.f32 %v532, %v536
        %538 = vrot.lane.b32.xlu0 %v449, 96
        %v539 = vpop.permute.xlu0 %538
        %v542 = vsel %vm450, %v537, 0
        %544 = vmatprep.subr.mxu0 0.0
        %545 = vmatpush1.msra.mxu0 0.0
        %546 = vmatprep.subr.mxu0 0.0
        %547 = vmatpush1.msra.mxu0 0.0
        %548 = vmatprep.subr.mxu0 0.0
        %549 = vmatpush1.msra.mxu0 0.0
        %550 = vmatprep.subr.mxu0 0.0
        %551 = vmatpush1.msra.mxu0 0.0
        %552 = vmatprep.subr.mxu0 0.0
        %553 = vmatpush1.msra.mxu0 0.0
        %554 = vmatprep.subr.mxu0 0.0
        %555 = vmatpush1.msra.mxu0 0.0
        %556 = vmatprep.subr.mxu0 0.0
        %557 = vmatpush1.msra.mxu0 0.0
        %558 = vmatprep.subr.mxu0 0.0
        %559 = vmatpush1.msra.mxu0 0.0
        %560 = vmatprep.subr.mxu0 0.0
        %561 = vmatpush1.msra.mxu0 0.0
        %562 = vmatprep.subr.mxu0 0.0
        %563 = vmatpush1.msra.mxu0 0.0
        %564 = vmatprep.subr.mxu0 0.0
        %565 = vmatpush1.msra.mxu0 0.0
        %566 = vmatprep.subr.mxu0 0.0
        %567 = vmatpush1.msra.mxu0 0.0
        %568 = vmatprep.subr.mxu0 0.0
        %569 = vmatpush1.msra.mxu0 0.0
        %570 = vmatprep.subr.mxu0 0.0
        %571 = vmatpush1.msra.mxu0 0.0
        %572 = vmatprep.subr.mxu0 0.0
        %573 = vmatpush1.msra.mxu0 0.0
        %574 = vmatprep.subr.mxu0 0.0
        %575 = vmatpush1.msra.mxu0 %v539
        %576 = vmatprep.subr.mxu0 0.0
        %577 = vmatpush2.msra.mxu0 0.0
        %578 = vmatprep.subr.mxu0 0.0
        %579 = vmatpush2.msra.mxu0 0.0
        %580 = vmatprep.subr.mxu0 0.0
        %581 = vmatpush2.msra.mxu0 0.0
        %582 = vmatprep.subr.mxu0 0.0
        %583 = vmatpush2.msra.mxu0 0.0
        %584 = vmatprep.subr.mxu0 0.0
        %585 = vmatpush2.msra.mxu0 0.0
        %586 = vmatprep.subr.mxu0 0.0
        %587 = vmatpush2.msra.mxu0 0.0
        %588 = vmatprep.subr.mxu0 0.0
        %589 = vmatpush2.msra.mxu0 0.0
        %590 = vmatprep.subr.mxu0 0.0
        %591 = vmatpush2.msra.mxu0 0.0
        %592 = vmatprep.subr.mxu0 0.0
        %593 = vmatpush2.msra.mxu0 0.0
        %594 = vmatprep.subr.mxu0 0.0
        %595 = vmatpush2.msra.mxu0 0.0
        %596 = vmatprep.subr.mxu0 0.0
        %597 = vmatpush2.msra.mxu0 0.0
        %598 = vmatprep.subr.mxu0 0.0
        %599 = vmatpush2.msra.mxu0 0.0
        %600 = vmatprep.subr.mxu0 0.0
        %601 = vmatpush2.msra.mxu0 0.0
        %602 = vmatprep.subr.mxu0 0.0
        %603 = vmatpush2.msra.mxu0 0.0
        %604 = vmatprep.subr.mxu0 0.0
        %605 = vmatpush2.msra.mxu0 0.0
        %606 = vmatprep.subr.mxu0 0.0
        %607 = vmatpush2.msra.mxu0 0.0
        %608 = vmatprep.mubr.f32.mxu0 0.0
        %609 = vmatmul.mubr.f32.gmra.mxu0 %v542
        %v610 = vpop.f32.mrf.mxu0
        %v611 = vadd.f32 0.0, %v610
        %v612 = vpop.f32.mrf.mxu0
        %613 = vdwg.mxu0
        %614 = vst.msk [vmem:[#allocation4] sm:$0xff] %vm450, %v611
        %v615 = vld [vmem:[#allocation3] sm:$0xff]
        %v616 = vld [vmem:[#allocation2] sm:$0xff]
        %618 = vrot.lane.b32.xlu0 %v615, 120
        %v619 = vpop.permute.xlu0 %618
        %621 = vrot.lane.b32.xlu0 %v616, 120
        %v622 = vpop.permute.xlu0 %621
        %v623 = vsel %vm450, %v619, 0
        %v625 = vsel %vm450, %v622, 0
        %627 = vmatprep.subr.mxu0 0.0
        %628 = vmatpush1.xpose.msra.mxu0 0.0
        %629 = vmatprep.subr.mxu0 0.0
        %630 = vmatpush1.xpose.msra.mxu0 0.0
        %631 = vmatprep.subr.mxu0 0.0
        %632 = vmatpush1.xpose.msra.mxu0 0.0
        %633 = vmatprep.subr.mxu0 0.0
        %634 = vmatpush1.xpose.msra.mxu0 0.0
        %635 = vmatprep.subr.mxu0 0.0
        %636 = vmatpush1.xpose.msra.mxu0 0.0
        %637 = vmatprep.subr.mxu0 0.0
        %638 = vmatpush1.xpose.msra.mxu0 0.0
        %639 = vmatprep.subr.mxu0 0.0
        %640 = vmatpush1.xpose.msra.mxu0 0.0
        %641 = vmatprep.subr.mxu0 0.0
        %642 = vmatpush1.xpose.msra.mxu0 0.0
        %643 = vmatprep.subr.mxu0 0.0
        %644 = vmatpush1.xpose.msra.mxu0 0.0
        %645 = vmatprep.subr.mxu0 0.0
        %646 = vmatpush1.xpose.msra.mxu0 0.0
        %647 = vmatprep.subr.mxu0 0.0
        %648 = vmatpush1.xpose.msra.mxu0 0.0
        %649 = vmatprep.subr.mxu0 0.0
        %650 = vmatpush1.xpose.msra.mxu0 0.0
        %651 = vmatprep.subr.mxu0 0.0
        %652 = vmatpush1.xpose.msra.mxu0 0.0
        %653 = vmatprep.subr.mxu0 0.0
        %654 = vmatpush1.xpose.msra.mxu0 0.0
        %655 = vmatprep.subr.mxu0 0.0
        %656 = vmatpush1.xpose.msra.mxu0 0.0
        %657 = vmatprep.subr.mxu0 0.0
        %658 = vmatpush1.xpose.msra.mxu0 %v625
        %659 = vmatprep.subr.mxu0 0.0
        %660 = vmatpush2.xpose.msra.mxu0 0.0
        %661 = vmatprep.subr.mxu0 0.0
        %662 = vmatpush2.xpose.msra.mxu0 0.0
        %663 = vmatprep.subr.mxu0 0.0
        %664 = vmatpush2.xpose.msra.mxu0 0.0
        %665 = vmatprep.subr.mxu0 0.0
        %666 = vmatpush2.xpose.msra.mxu0 0.0
        %667 = vmatprep.subr.mxu0 0.0
        %668 = vmatpush2.xpose.msra.mxu0 0.0
        %669 = vmatprep.subr.mxu0 0.0
        %670 = vmatpush2.xpose.msra.mxu0 0.0
        %671 = vmatprep.subr.mxu0 0.0
        %672 = vmatpush2.xpose.msra.mxu0 0.0
        %673 = vmatprep.subr.mxu0 0.0
        %674 = vmatpush2.xpose.msra.mxu0 0.0
        %675 = vmatprep.subr.mxu0 0.0
        %676 = vmatpush2.xpose.msra.mxu0 0.0
        %677 = vmatprep.subr.mxu0 0.0
        %678 = vmatpush2.xpose.msra.mxu0 0.0
        %679 = vmatprep.subr.mxu0 0.0
        %680 = vmatpush2.xpose.msra.mxu0 0.0
        %681 = vmatprep.subr.mxu0 0.0
        %682 = vmatpush2.xpose.msra.mxu0 0.0
        %683 = vmatprep.subr.mxu0 0.0
        %684 = vmatpush2.xpose.msra.mxu0 0.0
        %685 = vmatprep.subr.mxu0 0.0
        %686 = vmatpush2.xpose.msra.mxu0 0.0
        %687 = vmatprep.subr.mxu0 0.0
        %688 = vmatpush2.xpose.msra.mxu0 0.0
        %689 = vmatprep.subr.mxu0 0.0
        %690 = vmatpush2.xpose.msra.mxu0 0.0
        %691 = vmatprep.mubr.f32.mxu0 0.0
        %692 = vmatmul.mubr.f32.gmra.mxu0 %v623
        %v693 = vpop.f32.mrf.mxu0
        %v694 = vadd.f32 %v447, %v693
        %v695 = vpop.f32.mrf.mxu0
        %696 = vdwg.mxu0
        %v697 = vsel %vm450, %v694, -inf
        %698 = vmax.xlane.f32.xlu0 %v697
        %v699 = vpop.xlane.xlu0 %698
        %v700 = vsub.f32 %v694, %v699
        %v701 = vmul.f32 %v700, 1.442695
        %v702 = vpow.pop %v701
        %v703 = vsel %vm450, %v702, 0.0
        %704 = vadd.xlane.f32.xlu0 %v703
        %v705 = vpop.xlane.xlu0 %704
        %v706 = vrcp.pop %v705
        %v707 = vmul.f32 %v702, %v706
        %708 = vrot.lane.b32.xlu0 %v616, 88
        %v709 = vpop.permute.xlu0 %708
        %v712 = vsel %vm450, %v707, 0
        %714 = vmatprep.subr.mxu0 0.0
        %715 = vmatpush1.msra.mxu0 0.0
        %716 = vmatprep.subr.mxu0 0.0
        %717 = vmatpush1.msra.mxu0 0.0
        %718 = vmatprep.subr.mxu0 0.0
        %719 = vmatpush1.msra.mxu0 0.0
        %720 = vmatprep.subr.mxu0 0.0
        %721 = vmatpush1.msra.mxu0 0.0
        %722 = vmatprep.subr.mxu0 0.0
        %723 = vmatpush1.msra.mxu0 0.0
        %724 = vmatprep.subr.mxu0 0.0
        %725 = vmatpush1.msra.mxu0 0.0
        %726 = vmatprep.subr.mxu0 0.0
        %727 = vmatpush1.msra.mxu0 0.0
        %728 = vmatprep.subr.mxu0 0.0
        %729 = vmatpush1.msra.mxu0 0.0
        %730 = vmatprep.subr.mxu0 0.0
        %731 = vmatpush1.msra.mxu0 0.0
        %732 = vmatprep.subr.mxu0 0.0
        %733 = vmatpush1.msra.mxu0 0.0
        %734 = vmatprep.subr.mxu0 0.0
        %735 = vmatpush1.msra.mxu0 0.0
        %736 = vmatprep.subr.mxu0 0.0
        %737 = vmatpush1.msra.mxu0 0.0
        %738 = vmatprep.subr.mxu0 0.0
        %739 = vmatpush1.msra.mxu0 0.0
        %740 = vmatprep.subr.mxu0 0.0
        %741 = vmatpush1.msra.mxu0 0.0
        %742 = vmatprep.subr.mxu0 0.0
        %743 = vmatpush1.msra.mxu0 0.0
        %744 = vmatprep.subr.mxu0 0.0
        %745 = vmatpush1.msra.mxu0 %v709
        %746 = vmatprep.subr.mxu0 0.0
        %747 = vmatpush2.msra.mxu0 0.0
        %748 = vmatprep.subr.mxu0 0.0
        %749 = vmatpush2.msra.mxu0 0.0
        %750 = vmatprep.subr.mxu0 0.0
        %751 = vmatpush2.msra.mxu0 0.0
        %752 = vmatprep.subr.mxu0 0.0
        %753 = vmatpush2.msra.mxu0 0.0
        %754 = vmatprep.subr.mxu0 0.0
        %755 = vmatpush2.msra.mxu0 0.0
        %756 = vmatprep.subr.mxu0 0.0
        %757 = vmatpush2.msra.mxu0 0.0
        %758 = vmatprep.subr.mxu0 0.0
        %759 = vmatpush2.msra.mxu0 0.0
        %760 = vmatprep.subr.mxu0 0.0
        %761 = vmatpush2.msra.mxu0 0.0
        %762 = vmatprep.subr.mxu0 0.0
        %763 = vmatpush2.msra.mxu0 0.0
        %764 = vmatprep.subr.mxu0 0.0
        %765 = vmatpush2.msra.mxu0 0.0
        %766 = vmatprep.subr.mxu0 0.0
        %767 = vmatpush2.msra.mxu0 0.0
        %768 = vmatprep.subr.mxu0 0.0
        %769 = vmatpush2.msra.mxu0 0.0
        %770 = vmatprep.subr.mxu0 0.0
        %771 = vmatpush2.msra.mxu0 0.0
        %772 = vmatprep.subr.mxu0 0.0
        %773 = vmatpush2.msra.mxu0 0.0
        %774 = vmatprep.subr.mxu0 0.0
        %775 = vmatpush2.msra.mxu0 0.0
        %776 = vmatprep.subr.mxu0 0.0
        %777 = vmatpush2.msra.mxu0 0.0
        %778 = vmatprep.mubr.f32.mxu0 0.0
        %779 = vmatmul.mubr.f32.gmra.mxu0 %v712
        %v780 = vpop.f32.mrf.mxu0
        %v781 = vadd.f32 0.0, %v780
        %v782 = vpop.f32.mrf.mxu0
        %783 = vdwg.mxu0
        %785 = vrot.lane.b32.xlu0 %v781, 8
        %v786 = vpop.permute.xlu0 %785
        %vm788 = vcmask 130112
        %789 = vst.msk [vmem:[#allocation4] sm:$0xff] %vm788, %v786
        %v790 = vld [vmem:[#allocation3] sm:$0xff]
        %v791 = vld [vmem:[#allocation2] sm:$0xff]
        %793 = vrot.lane.b32.xlu0 %v790, 112
        %v794 = vpop.permute.xlu0 %793
        %796 = vrot.lane.b32.xlu0 %v791, 112
        %v797 = vpop.permute.xlu0 %796
        %v798 = vsel %vm450, %v794, 0
        %v800 = vsel %vm450, %v797, 0
        %802 = vmatprep.subr.mxu0 0.0
        %803 = vmatpush1.xpose.msra.mxu0 0.0
        %804 = vmatprep.subr.mxu0 0.0
        %805 = vmatpush1.xpose.msra.mxu0 0.0
        %806 = vmatprep.subr.mxu0 0.0
        %807 = vmatpush1.xpose.msra.mxu0 0.0
        %808 = vmatprep.subr.mxu0 0.0
        %809 = vmatpush1.xpose.msra.mxu0 0.0
        %810 = vmatprep.subr.mxu0 0.0
        %811 = vmatpush1.xpose.msra.mxu0 0.0
        %812 = vmatprep.subr.mxu0 0.0
        %813 = vmatpush1.xpose.msra.mxu0 0.0
        %814 = vmatprep.subr.mxu0 0.0
        %815 = vmatpush1.xpose.msra.mxu0 0.0
        %816 = vmatprep.subr.mxu0 0.0
        %817 = vmatpush1.xpose.msra.mxu0 0.0
        %818 = vmatprep.subr.mxu0 0.0
        %819 = vmatpush1.xpose.msra.mxu0 0.0
        %820 = vmatprep.subr.mxu0 0.0
        %821 = vmatpush1.xpose.msra.mxu0 0.0
        %822 = vmatprep.subr.mxu0 0.0
        %823 = vmatpush1.xpose.msra.mxu0 0.0
        %824 = vmatprep.subr.mxu0 0.0
        %825 = vmatpush1.xpose.msra.mxu0 0.0
        %826 = vmatprep.subr.mxu0 0.0
        %827 = vmatpush1.xpose.msra.mxu0 0.0
        %828 = vmatprep.subr.mxu0 0.0
        %829 = vmatpush1.xpose.msra.mxu0 0.0
        %830 = vmatprep.subr.mxu0 0.0
        %831 = vmatpush1.xpose.msra.mxu0 0.0
        %832 = vmatprep.subr.mxu0 0.0
        %833 = vmatpush1.xpose.msra.mxu0 %v800
        %834 = vmatprep.subr.mxu0 0.0
        %835 = vmatpush2.xpose.msra.mxu0 0.0
        %836 = vmatprep.subr.mxu0 0.0
        %837 = vmatpush2.xpose.msra.mxu0 0.0
        %838 = vmatprep.subr.mxu0 0.0
        %839 = vmatpush2.xpose.msra.mxu0 0.0
        %840 = vmatprep.subr.mxu0 0.0
        %841 = vmatpush2.xpose.msra.mxu0 0.0
        %842 = vmatprep.subr.mxu0 0.0
        %843 = vmatpush2.xpose.msra.mxu0 0.0
        %844 = vmatprep.subr.mxu0 0.0
        %845 = vmatpush2.xpose.msra.mxu0 0.0
        %846 = vmatprep.subr.mxu0 0.0
        %847 = vmatpush2.xpose.msra.mxu0 0.0
        %848 = vmatprep.subr.mxu0 0.0
        %849 = vmatpush2.xpose.msra.mxu0 0.0
        %850 = vmatprep.subr.mxu0 0.0
        %851 = vmatpush2.xpose.msra.mxu0 0.0
        %852 = vmatprep.subr.mxu0 0.0
        %853 = vmatpush2.xpose.msra.mxu0 0.0
        %854 = vmatprep.subr.mxu0 0.0
        %855 = vmatpush2.xpose.msra.mxu0 0.0
        %856 = vmatprep.subr.mxu0 0.0
        %857 = vmatpush2.xpose.msra.mxu0 0.0
        %858 = vmatprep.subr.mxu0 0.0
        %859 = vmatpush2.xpose.msra.mxu0 0.0
        %860 = vmatprep.subr.mxu0 0.0
        %861 = vmatpush2.xpose.msra.mxu0 0.0
        %862 = vmatprep.subr.mxu0 0.0
        %863 = vmatpush2.xpose.msra.mxu0 0.0
        %864 = vmatprep.subr.mxu0 0.0
        %865 = vmatpush2.xpose.msra.mxu0 0.0
        %866 = vmatprep.mubr.f32.mxu0 0.0
        %867 = vmatmul.mubr.f32.gmra.mxu0 %v798
        %v868 = vpop.f32.mrf.mxu0
        %v869 = vadd.f32 %v447, %v868
        %v870 = vpop.f32.mrf.mxu0
        %871 = vdwg.mxu0
        %v872 = vsel %vm450, %v869, -inf
        %873 = vmax.xlane.f32.xlu0 %v872
        %v874 = vpop.xlane.xlu0 %873
        %v875 = vsub.f32 %v869, %v874
        %v876 = vmul.f32 %v875, 1.442695
        %v877 = vpow.pop %v876
        %v878 = vsel %vm450, %v877, 0.0
        %879 = vadd.xlane.f32.xlu0 %v878
        %v880 = vpop.xlane.xlu0 %879
        %v881 = vrcp.pop %v880
        %v882 = vmul.f32 %v877, %v881
        %883 = vrot.lane.b32.xlu0 %v791, 80
        %v884 = vpop.permute.xlu0 %883
        %v887 = vsel %vm450, %v882, 0
        %889 = vmatprep.subr.mxu0 0.0
        %890 = vmatpush1.msra.mxu0 0.0
        %891 = vmatprep.subr.mxu0 0.0
        %892 = vmatpush1.msra.mxu0 0.0
        %893 = vmatprep.subr.mxu0 0.0
        %894 = vmatpush1.msra.mxu0 0.0
        %895 = vmatprep.subr.mxu0 0.0
        %896 = vmatpush1.msra.mxu0 0.0
        %897 = vmatprep.subr.mxu0 0.0
        %898 = vmatpush1.msra.mxu0 0.0
        %899 = vmatprep.subr.mxu0 0.0
        %900 = vmatpush1.msra.mxu0 0.0
        %901 = vmatprep.subr.mxu0 0.0
        %902 = vmatpush1.msra.mxu0 0.0
        %903 = vmatprep.subr.mxu0 0.0
        %904 = vmatpush1.msra.mxu0 0.0
        %905 = vmatprep.subr.mxu0 0.0
        %906 = vmatpush1.msra.mxu0 0.0
        %907 = vmatprep.subr.mxu0 0.0
        %908 = vmatpush1.msra.mxu0 0.0
        %909 = vmatprep.subr.mxu0 0.0
        %910 = vmatpush1.msra.mxu0 0.0
        %911 = vmatprep.subr.mxu0 0.0
        %912 = vmatpush1.msra.mxu0 0.0
        %913 = vmatprep.subr.mxu0 0.0
        %914 = vmatpush1.msra.mxu0 0.0
        %915 = vmatprep.subr.mxu0 0.0
        %916 = vmatpush1.msra.mxu0 0.0
        %917 = vmatprep.subr.mxu0 0.0
        %918 = vmatpush1.msra.mxu0 0.0
        %919 = vmatprep.subr.mxu0 0.0
        %920 = vmatpush1.msra.mxu0 %v884
        %921 = vmatprep.subr.mxu0 0.0
        %922 = vmatpush2.msra.mxu0 0.0
        %923 = vmatprep.subr.mxu0 0.0
        %924 = vmatpush2.msra.mxu0 0.0
        %925 = vmatprep.subr.mxu0 0.0
        %926 = vmatpush2.msra.mxu0 0.0
        %927 = vmatprep.subr.mxu0 0.0
        %928 = vmatpush2.msra.mxu0 0.0
        %929 = vmatprep.subr.mxu0 0.0
        %930 = vmatpush2.msra.mxu0 0.0
        %931 = vmatprep.subr.mxu0 0.0
        %932 = vmatpush2.msra.mxu0 0.0
        %933 = vmatprep.subr.mxu0 0.0
        %934 = vmatpush2.msra.mxu0 0.0
        %935 = vmatprep.subr.mxu0 0.0
        %936 = vmatpush2.msra.mxu0 0.0
        %937 = vmatprep.subr.mxu0 0.0
        %938 = vmatpush2.msra.mxu0 0.0
        %939 = vmatprep.subr.mxu0 0.0
        %940 = vmatpush2.msra.mxu0 0.0
        %941 = vmatprep.subr.mxu0 0.0
        %942 = vmatpush2.msra.mxu0 0.0
        %943 = vmatprep.subr.mxu0 0.0
        %944 = vmatpush2.msra.mxu0 0.0
        %945 = vmatprep.subr.mxu0 0.0
        %946 = vmatpush2.msra.mxu0 0.0
        %947 = vmatprep.subr.mxu0 0.0
        %948 = vmatpush2.msra.mxu0 0.0
        %949 = vmatprep.subr.mxu0 0.0
        %950 = vmatpush2.msra.mxu0 0.0
        %951 = vmatprep.subr.mxu0 0.0
        %952 = vmatpush2.msra.mxu0 0.0
        %953 = vmatprep.mubr.f32.mxu0 0.0
        %954 = vmatmul.mubr.f32.gmra.mxu0 %v887
        %v955 = vpop.f32.mrf.mxu0
        %v956 = vadd.f32 0.0, %v955
        %v957 = vpop.f32.mrf.mxu0
        %958 = vdwg.mxu0
        %960 = vrot.lane.b32.xlu0 %v956, 16
        %v961 = vpop.permute.xlu0 %960
        %vm963 = vcmask 195712
        %964 = vst.msk [vmem:[#allocation4] sm:$0xff] %vm963, %v961
        %v965 = vld [vmem:[#allocation3] sm:$0xff]
        %v966 = vld [vmem:[#allocation2] sm:$0xff]
        %968 = vrot.lane.b32.xlu0 %v965, 104
        %v969 = vpop.permute.xlu0 %968
        %971 = vrot.lane.b32.xlu0 %v966, 104
        %v972 = vpop.permute.xlu0 %971
        %v973 = vsel %vm450, %v969, 0
        %v975 = vsel %vm450, %v972, 0
        %977 = vmatprep.subr.mxu0 0.0
        %978 = vmatpush1.xpose.msra.mxu0 0.0
        %979 = vmatprep.subr.mxu0 0.0
        %980 = vmatpush1.xpose.msra.mxu0 0.0
        %981 = vmatprep.subr.mxu0 0.0
        %982 = vmatpush1.xpose.msra.mxu0 0.0
        %983 = vmatprep.subr.mxu0 0.0
        %984 = vmatpush1.xpose.msra.mxu0 0.0
        %985 = vmatprep.subr.mxu0 0.0
        %986 = vmatpush1.xpose.msra.mxu0 0.0
        %987 = vmatprep.subr.mxu0 0.0
        %988 = vmatpush1.xpose.msra.mxu0 0.0
        %989 = vmatprep.subr.mxu0 0.0
        %990 = vmatpush1.xpose.msra.mxu0 0.0
        %991 = vmatprep.subr.mxu0 0.0
        %992 = vmatpush1.xpose.msra.mxu0 0.0
        %993 = vmatprep.subr.mxu0 0.0
        %994 = vmatpush1.xpose.msra.mxu0 0.0
        %995 = vmatprep.subr.mxu0 0.0
        %996 = vmatpush1.xpose.msra.mxu0 0.0
        %997 = vmatprep.subr.mxu0 0.0
        %998 = vmatpush1.xpose.msra.mxu0 0.0
        %999 = vmatprep.subr.mxu0 0.0
        %1000 = vmatpush1.xpose.msra.mxu0 0.0
        %1001 = vmatprep.subr.mxu0 0.0
        %1002 = vmatpush1.xpose.msra.mxu0 0.0
        %1003 = vmatprep.subr.mxu0 0.0
        %1004 = vmatpush1.xpose.msra.mxu0 0.0
        %1005 = vmatprep.subr.mxu0 0.0
        %1006 = vmatpush1.xpose.msra.mxu0 0.0
        %1007 = vmatprep.subr.mxu0 0.0
        %1008 = vmatpush1.xpose.msra.mxu0 %v975
        %1009 = vmatprep.subr.mxu0 0.0
        %1010 = vmatpush2.xpose.msra.mxu0 0.0
        %1011 = vmatprep.subr.mxu0 0.0
        %1012 = vmatpush2.xpose.msra.mxu0 0.0
        %1013 = vmatprep.subr.mxu0 0.0
        %1014 = vmatpush2.xpose.msra.mxu0 0.0
        %1015 = vmatprep.subr.mxu0 0.0
        %1016 = vmatpush2.xpose.msra.mxu0 0.0
        %1017 = vmatprep.subr.mxu0 0.0
        %1018 = vmatpush2.xpose.msra.mxu0 0.0
        %1019 = vmatprep.subr.mxu0 0.0
        %1020 = vmatpush2.xpose.msra.mxu0 0.0
        %1021 = vmatprep.subr.mxu0 0.0
        %1022 = vmatpush2.xpose.msra.mxu0 0.0
        %1023 = vmatprep.subr.mxu0 0.0
        %1024 = vmatpush2.xpose.msra.mxu0 0.0
        %1025 = vmatprep.subr.mxu0 0.0
        %1026 = vmatpush2.xpose.msra.mxu0 0.0
        %1027 = vmatprep.subr.mxu0 0.0
        %1028 = vmatpush2.xpose.msra.mxu0 0.0
        %1029 = vmatprep.subr.mxu0 0.0
        %1030 = vmatpush2.xpose.msra.mxu0 0.0
        %1031 = vmatprep.subr.mxu0 0.0
        %1032 = vmatpush2.xpose.msra.mxu0 0.0
        %1033 = vmatprep.subr.mxu0 0.0
        %1034 = vmatpush2.xpose.msra.mxu0 0.0
        %1035 = vmatprep.subr.mxu0 0.0
        %1036 = vmatpush2.xpose.msra.mxu0 0.0
        %1037 = vmatprep.subr.mxu0 0.0
        %1038 = vmatpush2.xpose.msra.mxu0 0.0
        %1039 = vmatprep.subr.mxu0 0.0
        %1040 = vmatpush2.xpose.msra.mxu0 0.0
        %1041 = vmatprep.mubr.f32.mxu0 0.0
        %1042 = vmatmul.mubr.f32.gmra.mxu0 %v973
        %v1043 = vpop.f32.mrf.mxu0
        %v1044 = vadd.f32 %v447, %v1043
        %v1045 = vpop.f32.mrf.mxu0
        %1046 = vdwg.mxu0
        %v1047 = vsel %vm450, %v1044, -inf
        %1048 = vmax.xlane.f32.xlu0 %v1047
        %v1049 = vpop.xlane.xlu0 %1048
        %v1050 = vsub.f32 %v1044, %v1049
        %v1051 = vmul.f32 %v1050, 1.442695
        %v1052 = vpow.pop %v1051
        %v1053 = vsel %vm450, %v1052, 0.0
        %1054 = vadd.xlane.f32.xlu0 %v1053
        %v1055 = vpop.xlane.xlu0 %1054
        %v1056 = vrcp.pop %v1055
        %v1057 = vmul.f32 %v1052, %v1056
        %1058 = vrot.lane.b32.xlu0 %v966, 72
        %v1059 = vpop.permute.xlu0 %1058
        %v1062 = vsel %vm450, %v1057, 0
        %1064 = vmatprep.subr.mxu0 0.0
        %1065 = vmatpush1.msra.mxu0 0.0
        %1066 = vmatprep.subr.mxu0 0.0
        %1067 = vmatpush1.msra.mxu0 0.0
        %1068 = vmatprep.subr.mxu0 0.0
        %1069 = vmatpush1.msra.mxu0 0.0
        %1070 = vmatprep.subr.mxu0 0.0
        %1071 = vmatpush1.msra.mxu0 0.0
        %1072 = vmatprep.subr.mxu0 0.0
        %1073 = vmatpush1.msra.mxu0 0.0
        %1074 = vmatprep.subr.mxu0 0.0
        %1075 = vmatpush1.msra.mxu0 0.0
        %1076 = vmatprep.subr.mxu0 0.0
        %1077 = vmatpush1.msra.mxu0 0.0
        %1078 = vmatprep.subr.mxu0 0.0
        %1079 = vmatpush1.msra.mxu0 0.0
        %1080 = vmatprep.subr.mxu0 0.0
        %1081 = vmatpush1.msra.mxu0 0.0
        %1082 = vmatprep.subr.mxu0 0.0
        %1083 = vmatpush1.msra.mxu0 0.0
        %1084 = vmatprep.subr.mxu0 0.0
        %1085 = vmatpush1.msra.mxu0 0.0
        %1086 = vmatprep.subr.mxu0 0.0
        %1087 = vmatpush1.msra.mxu0 0.0
        %1088 = vmatprep.subr.mxu0 0.0
        %1089 = vmatpush1.msra.mxu0 0.0
        %1090 = vmatprep.subr.mxu0 0.0
        %1091 = vmatpush1.msra.mxu0 0.0
        %1092 = vmatprep.subr.mxu0 0.0
        %1093 = vmatpush1.msra.mxu0 0.0
        %1094 = vmatprep.subr.mxu0 0.0
        %1095 = vmatpush1.msra.mxu0 %v1059
        %1096 = vmatprep.subr.mxu0 0.0
        %1097 = vmatpush2.msra.mxu0 0.0
        %1098 = vmatprep.subr.mxu0 0.0
        %1099 = vmatpush2.msra.mxu0 0.0
        %1100 = vmatprep.subr.mxu0 0.0
        %1101 = vmatpush2.msra.mxu0 0.0
        %1102 = vmatprep.subr.mxu0 0.0
        %1103 = vmatpush2.msra.mxu0 0.0
        %1104 = vmatprep.subr.mxu0 0.0
        %1105 = vmatpush2.msra.mxu0 0.0
        %1106 = vmatprep.subr.mxu0 0.0
        %1107 = vmatpush2.msra.mxu0 0.0
        %1108 = vmatprep.subr.mxu0 0.0
        %1109 = vmatpush2.msra.mxu0 0.0
        %1110 = vmatprep.subr.mxu0 0.0
        %1111 = vmatpush2.msra.mxu0 0.0
        %1112 = vmatprep.subr.mxu0 0.0
        %1113 = vmatpush2.msra.mxu0 0.0
        %1114 = vmatprep.subr.mxu0 0.0
        %1115 = vmatpush2.msra.mxu0 0.0
        %1116 = vmatprep.subr.mxu0 0.0
        %1117 = vmatpush2.msra.mxu0 0.0
        %1118 = vmatprep.subr.mxu0 0.0
        %1119 = vmatpush2.msra.mxu0 0.0
        %1120 = vmatprep.subr.mxu0 0.0
        %1121 = vmatpush2.msra.mxu0 0.0
        %1122 = vmatprep.subr.mxu0 0.0
        %1123 = vmatpush2.msra.mxu0 0.0
        %1124 = vmatprep.subr.mxu0 0.0
        %1125 = vmatpush2.msra.mxu0 0.0
        %1126 = vmatprep.subr.mxu0 0.0
        %1127 = vmatpush2.msra.mxu0 0.0
        %1128 = vmatprep.mubr.f32.mxu0 0.0
        %1129 = vmatmul.mubr.f32.gmra.mxu0 %v1062
        %v1130 = vpop.f32.mrf.mxu0
        %v1131 = vadd.f32 0.0, %v1130
        %v1132 = vpop.f32.mrf.mxu0
        %1133 = vdwg.mxu0
        %1135 = vrot.lane.b32.xlu0 %v1131, 24
        %v1136 = vpop.permute.xlu0 %1135
        %vm1138 = vcmask 261312
        %1139 = vst.msk [vmem:[#allocation4] sm:$0xff] %vm1138, %v1136
        %v1140 = vld [vmem:[#allocation4] sm:$0xff]
        %v1141 = vld [vmem:[#allocation10] sm:$0xff]
        %v1142 = vld [vmem:[#allocation10 + $0x8] sm:$0xff]
        %v1143 = vld [vmem:[#allocation10 + $0x10] sm:$0xff]
        %v1144 = vld [vmem:[#allocation10 + $0x18] sm:$0xff]
        %v1145 = vld [vmem:[%s3] sm:$0x1]
        %v1147 = vlaneseq
        %v1148 = vshrl.u32 %v1147, 7
        %v1149 = vsub.s32 0, %v1148
        %v1150 = vrot.slane %v1145, %v1149
        %v1153 = vsel %vm364, %v1140, 0
        %1155 = vmatprep.subr.mxu0 0.0
        %1156 = vmatpush1.msra.mxu0 0.0
        %1157 = vmatprep.subr.mxu0 0.0
        %1158 = vmatpush1.msra.mxu0 0.0
        %1159 = vmatprep.subr.mxu0 0.0
        %1160 = vmatpush1.msra.mxu0 0.0
        %1161 = vmatprep.subr.mxu0 0.0
        %1162 = vmatpush1.msra.mxu0 0.0
        %1163 = vmatprep.subr.mxu0 0.0
        %1164 = vmatpush1.msra.mxu0 0.0
        %1165 = vmatprep.subr.mxu0 0.0
        %1166 = vmatpush1.msra.mxu0 0.0
        %1167 = vmatprep.subr.mxu0 0.0
        %1168 = vmatpush1.msra.mxu0 0.0
        %1169 = vmatprep.subr.mxu0 0.0
        %1170 = vmatpush1.msra.mxu0 0.0
        %1171 = vmatprep.subr.mxu0 0.0
        %1172 = vmatpush1.msra.mxu0 0.0
        %1173 = vmatprep.subr.mxu0 0.0
        %1174 = vmatpush1.msra.mxu0 0.0
        %1175 = vmatprep.subr.mxu0 0.0
        %1176 = vmatpush1.msra.mxu0 0.0
        %1177 = vmatprep.subr.mxu0 0.0
        %1178 = vmatpush1.msra.mxu0 0.0
        %1179 = vmatprep.subr.mxu0 0.0
        %1180 = vmatpush1.msra.mxu0 %v1144
        %1181 = vmatprep.subr.mxu0 0.0
        %1182 = vmatpush1.msra.mxu0 %v1143
        %1183 = vmatprep.subr.mxu0 0.0
        %1184 = vmatpush1.msra.mxu0 %v1142
        %1185 = vmatprep.subr.mxu0 0.0
        %1186 = vmatpush1.msra.mxu0 %v1141
        %1187 = vmatprep.subr.mxu0 0.0
        %1188 = vmatpush2.msra.mxu0 0.0
        %1189 = vmatprep.subr.mxu0 0.0
        %1190 = vmatpush2.msra.mxu0 0.0
        %1191 = vmatprep.subr.mxu0 0.0
        %1192 = vmatpush2.msra.mxu0 0.0
        %1193 = vmatprep.subr.mxu0 0.0
        %1194 = vmatpush2.msra.mxu0 0.0
        %1195 = vmatprep.subr.mxu0 0.0
        %1196 = vmatpush2.msra.mxu0 0.0
        %1197 = vmatprep.subr.mxu0 0.0
        %1198 = vmatpush2.msra.mxu0 0.0
        %1199 = vmatprep.subr.mxu0 0.0
        %1200 = vmatpush2.msra.mxu0 0.0
        %1201 = vmatprep.subr.mxu0 0.0
        %1202 = vmatpush2.msra.mxu0 0.0
        %1203 = vmatprep.subr.mxu0 0.0
        %1204 = vmatpush2.msra.mxu0 0.0
        %1205 = vmatprep.subr.mxu0 0.0
        %1206 = vmatpush2.msra.mxu0 0.0
        %1207 = vmatprep.subr.mxu0 0.0
        %1208 = vmatpush2.msra.mxu0 0.0
        %1209 = vmatprep.subr.mxu0 0.0
        %1210 = vmatpush2.msra.mxu0 0.0
        %1211 = vmatprep.subr.mxu0 0.0
        %1212 = vmatpush2.msra.mxu0 0.0
        %1213 = vmatprep.subr.mxu0 0.0
        %1214 = vmatpush2.msra.mxu0 0.0
        %1215 = vmatprep.subr.mxu0 0.0
        %1216 = vmatpush2.msra.mxu0 0.0
        %1217 = vmatprep.subr.mxu0 0.0
        %1218 = vmatpush2.msra.mxu0 0.0
        %1219 = vmatprep.mubr.f32.mxu0 0.0
        %1220 = vmatmul.mubr.f32.gmra.mxu0 %v1153
        %v1221 = vpop.f32.mrf.mxu0
        %v1222 = vadd.f32 %v1150, %v1221
        %v1223 = vpop.f32.mrf.mxu0
        %1224 = vdwg.mxu0
        %1225 = vst.msk [vmem:[%s255] sm:$0xff] %vm364, %v1222
        %s1226 = sand.u32 %s133, 1
        %s1227 = scalar_lea.sflag [#allocation7], %s1226
        %s1228 = sand.u32 %s133, 1
        %s1229 = smul.addr %s1228, 8
        %s1230 = scalar_lea.vmem [#allocation11], %s1229
        // Predicated region
        $region53: #{tpu_custom_call.1} parent=35 // pred_check
          %p1231 = pneg %p143
        $region54: #{tpu_custom_call.1} parent=35 // pred_check_branch
          %1233 = sbr.rel (%p1231) target = $region56
        $region55: #{tpu_custom_call.1} parent=35 // pred_region
          %s1235 = ssub.s32 128, 128
          %1236 = vsyncadd %s1227, %s1235
          %s1237 = sadd.s32 %s27, %s26
          %s1238 = smul.addr %s1237, 128
          %s1239 = scalar_lea.hbm %s4, %s1238
          %s1241 = sshll.u32 %s1230, 4
          %s1242 = int_to_ptr.vmem [resolvable:$true] %s1241
          %1244 = dma.vmem_to_hbm [thread:$0]  %s1242, 128, %s1239, %s1227
        $region56: #{tpu_custom_call.1} parent=35 // pred_fallthru
          _
      $region36: #{tpu_custom_call.1} parent=5 // pred_fallthru
        _
      %p1245 = scmp.le.s32.totalorder 2, %s17
      // Predicated region
      $region57: #{tpu_custom_call.1} parent=5 // pred_check
        %p1246 = pneg %p1245
      $region58: #{tpu_custom_call.1} parent=5 // pred_check_branch
        %1248 = sbr.rel (%p1246) target = $region60
      $region59: #{tpu_custom_call.1} parent=5 // pred_region
        %s1249 = ssub.s32 %s17, 2
        // Predicated region
        $region61: #{tpu_custom_call.1} parent=59 // pred_check
          %p1250 = pneg %p149
        $region62: #{tpu_custom_call.1} parent=59 // pred_check_branch
          %1252 = sbr.rel (%p1250) target = $region64
        $region63: #{tpu_custom_call.1} parent=59 // pred_region
          %s1253 = sand.u32 %s134, 1
          %s1254 = scalar_lea.sflag [#allocation7], %s1253
          %s1255 = sand.u32 %s134, 1
          %s1256 = smul.addr %s1255, 8
          %s1257 = scalar_lea.vmem [#allocation11], %s1256
          %1258 = dma.done %s1254, 128
        $region64: #{tpu_custom_call.1} parent=59 // pred_fallthru
          _
      $region60: #{tpu_custom_call.1} parent=5 // pred_fallthru
        _
    $region6: #{tpu_custom_call.1} parent=1 // loop_footer
      %s21 = sadd.s32 1, %s17
    $region7: #{tpu_custom_call.1} parent=1 // loop_footer_branch
      %16 = sbr.rel target = $region3
    $region8: #{tpu_custom_call.1} parent=1 // loop_exit
      _
    %1259 = vsyncpa [#allocation6], 1
    %s1260 = scalar_lea.sflag [#allocation6], 1
    %1261 = vsyncpa %s1260, 1
    %1262 = vsyncpa [#allocation9], 1
    %1263 = vsyncpa [#allocation7], 1
    %s1264 = scalar_lea.sflag [#allocation7], 1
    %1265 = vsyncpa %s1264, 1

</llo_original>
